<compile_context>
chip_gen: v6e
topology: v6e:2x2x1
jax: 0.10.0
libtpu: 0.0.40
codegen_flags: <defaults>
</compile_context>

<pallas_src>
import functools

import numpy as np
import jax
import jax.numpy as jnp
from jax.experimental import pallas as pl
from jax.experimental.pallas import tpu as pltpu

MED_FRQ = [0.3829, 0.452448, 0.637584, 0.377464, 0.585595, 0.479574, 0.781544,
           0.982534, 1.017466, 0.624581, 2.589096, 0.980794, 0.92034, 0.667984,
           1.172291, 0.86224, 0.921714, 2.154782, 1.187832, 1.178115, 1.848545,
           1.428922, 2.849658, 0.771605, 1.656668, 4.483506, 2.209922, 1.12028,
           2.790182, 0.706519, 3.994768, 2.220004, 0.972934, 1.481525, 5.342475,
           0.750738, 4.040773]
NUM_CLASSES = len(MED_FRQ)   # 37
TILE_HW = 2048               # pixels per grid step (lane axis); multiple of 128


def _ce_kernel(x_ref, t_ref, w_ref, loss_ref, cnt_ref, acc_loss, acc_cnt, *, hw):
    # x_ref    : (1, C, T)  logits tile (classes on sublanes, pixels on lanes)
    # t_ref    : (1, 1, T)  raw int targets (0 = ignore)
    # w_ref    : (C, 1)     class weights
    # loss_ref : (1, 1, 1)  per-batch-element weighted-NLL sum (written at end)
    # cnt_ref  : (1, 1, 1)  per-batch-element valid-pixel count (written at end)
    # acc_loss / acc_cnt : (1, T) f32 VMEM scratch accumulators
    j = pl.program_id(1)

    @pl.when(j == 0)
    def _():
        acc_loss[...] = jnp.zeros_like(acc_loss)
        acc_cnt[...] = jnp.zeros_like(acc_cnt)

    x = x_ref[0].astype(jnp.float32)           # (C, T)  upcast (bf16-friendly)
    t = t_ref[0]                               # (1, T)  int32
    w = w_ref[...]                             # (C, 1)  f32
    c, tl = x.shape

    # Position mask: the last pixel tile may extend past HW (Pallas pads the
    # block with unspecified data) -- mask those lanes and sanitize the logits.
    lane = jax.lax.broadcasted_iota(jnp.int32, (1, tl), 1)
    in_bounds = (j * tl + lane) < hw                      # (1, T) bool
    valid = jnp.logical_and(t > 0, in_bounds)             # (1, T) bool
    tm = jnp.where(valid, t - 1, 0)                       # shifted class index
    x = jnp.where(in_bounds, x, 0.0)

    # log-sum-exp over the class (sublane) axis
    m = jnp.max(x, axis=0, keepdims=True)                              # (1, T)
    lse = m + jnp.log(jnp.sum(jnp.exp(x - m), axis=0, keepdims=True))  # (1, T)

    # one-hot gather of the target logit and its class weight
    cls = jax.lax.broadcasted_iota(jnp.int32, (c, tl), 0)
    onehot = (cls == tm).astype(jnp.float32)                           # (C, T)
    picked = jnp.sum(x * onehot, axis=0, keepdims=True)                # (1, T)
    wt = jnp.sum(w * onehot, axis=0, keepdims=True)                    # (1, T)

    validf = valid.astype(jnp.float32)
    acc_loss[...] += wt * (lse - picked) * validf          # weighted masked NLL
    acc_cnt[...] += validf

    @pl.when(j == pl.num_programs(1) - 1)
    def _():
        loss_ref[...] = jnp.sum(acc_loss[...]).reshape(1, 1, 1)
        cnt_ref[...] = jnp.sum(acc_cnt[...]).reshape(1, 1, 1)


def _ce_scale(logits_nchw, targets_nhw, weight):
    """One scale: masked mean of per-pixel weighted cross-entropy."""
    N, C, H, W = logits_nchw.shape
    HW = H * W
    x = logits_nchw.reshape(N, C, HW)                    # trailing-dim collapse only
    t = targets_nhw.reshape(N, 1, HW).astype(jnp.int32)
    w = weight.astype(jnp.float32).reshape(C, 1)

    # Block last dim must be a multiple of 128 or equal the full dim.
    tile = HW if HW <= TILE_HW else TILE_HW
    num_tiles = pl.cdiv(HW, tile)

    loss_sums, cnts = pl.pallas_call(
        functools.partial(_ce_kernel, hw=HW),
        out_shape=(jax.ShapeDtypeStruct((N, 1, 1), jnp.float32),
                   jax.ShapeDtypeStruct((N, 1, 1), jnp.float32)),
        grid_spec=pltpu.PrefetchScalarGridSpec(
            num_scalar_prefetch=0,
            grid=(N, num_tiles),
            in_specs=[pl.BlockSpec((1, C, tile), lambda n, j: (n, 0, j)),
                      pl.BlockSpec((1, 1, tile), lambda n, j: (n, 0, j)),
                      pl.BlockSpec((C, 1), lambda n, j: (0, 0))],
            out_specs=[pl.BlockSpec((1, 1, 1), lambda n, j: (n, 0, 0)),
                       pl.BlockSpec((1, 1, 1), lambda n, j: (n, 0, 0))],
            scratch_shapes=[pltpu.VMEM((1, tile), jnp.float32),
                            pltpu.VMEM((1, tile), jnp.float32)]),
        compiler_params=pltpu.CompilerParams(
            dimension_semantics=("parallel", "arbitrary")),
    )(x, t, w)

    # NOTE: if a scale has zero valid pixels, cnt == 0 -> NaN, identical to the
    # PyTorch reference (which divides by sum(mask) unguarded).
    return jnp.sum(loss_sums) / jnp.sum(cnts)


def cross_entropy_loss_2d(inputs_scales, targets_scales, weight):
    total = jnp.float32(0.0)
    for inp, tgt in zip(inputs_scales, targets_scales):
        total = total + _ce_scale(inp, tgt, weight)
    return total


def _reference(inputs_scales, targets_scales, weight):
    total = jnp.float32(0.0)
    for x, t in zip(inputs_scales, targets_scales):
        mask = t > 0
        tm = jnp.where(mask, t - 1, 0)
        logp = jax.nn.log_softmax(x.astype(jnp.float32), axis=1)     # (N,C,H,W)
        picked = jnp.take_along_axis(logp, tm[:, None], axis=1)[:, 0]
        loss = -weight[tm] * picked
        total = total + (jnp.sum(jnp.where(mask, loss, 0.0))
                         / jnp.sum(mask.astype(jnp.float32)))
    return total


if __name__ == "__main__":
    key = jax.random.PRNGKey(0)
    weight = jnp.asarray(np.array(MED_FRQ, dtype=np.float32))

    # Two "scales", like the module's list-of-scales forward.
    shapes = [((2, NUM_CLASSES, 16, 16), (2, 16, 16)),
              ((2, NUM_CLASSES, 8, 8), (2, 8, 8))]
    inputs_scales, targets_scales = [], []
    for (xs, ts) in shapes:
        key, kx, kt = jax.random.split(key, 3)
        inputs_scales.append(jax.random.normal(kx, xs, dtype=jnp.float32))
        # labels in [0, NUM_CLASSES]; 0 means "ignore"
        targets_scales.append(
            jax.random.randint(kt, ts, 0, NUM_CLASSES + 1, dtype=jnp.int32))

    loss_fn = jax.jit(cross_entropy_loss_2d)
    out = jax.block_until_ready(loss_fn(inputs_scales, targets_scales, weight))

    ref = jax.block_until_ready(_reference(inputs_scales, targets_scales, weight))
    np.testing.assert_allclose(np.asarray(out), np.asarray(ref),
                               rtol=1e-4, atol=1e-4)
    print("KERNEL_OK")
</pallas_src>

<mosaic_0001>
module attributes {stable_mosaic.version = 11 : i64} {
  func.func @_ce_kernel(%arg0: i32, %arg1: i32, %arg2: memref<1x37x256xf32, #tpu.memory_space<vmem>>, %arg3: memref<1x1x256xi32, #tpu.memory_space<vmem>>, %arg4: memref<37x1xf32, #tpu.memory_space<vmem>>, %arg5: memref<1x1x1xf32, #tpu.memory_space<vmem>>, %arg6: memref<1x1x1xf32, #tpu.memory_space<vmem>>, %arg7: memref<1x256xf32, #tpu.memory_space<vmem>>, %arg8: memref<1x256xf32, #tpu.memory_space<vmem>>) attributes {dimension_semantics = [#tpu.dimension_semantics<parallel>, #tpu.dimension_semantics<arbitrary>], iteration_bounds = array<i64: 2, 1>, scalar_prefetch = 0 : i64, scratch_operands = 2 : i64, tpu.core_type = #tpu.core_type<tc>, window_params = [{transform_indices = @transform_0, window_bounds = array<i64: 1, 37, 256>}, {transform_indices = @transform_1, window_bounds = array<i64: 1, 1, 256>}, {pipeline_mode = #tpu.pipeline_mode<synchronous>, transform_indices = @transform_2, window_bounds = array<i64: 37, 1>}, {transform_indices = @transform_3, window_bounds = array<i64: 1, 1, 1>}, {transform_indices = @transform_4, window_bounds = array<i64: 1, 1, 1>}]} {
    %c0_i32 = arith.constant 0 : i32
    %0 = arith.cmpi eq, %arg1, %c0_i32 : i32
    %1 = arith.extui %0 : i1 to i32
    %c0_i32_0 = arith.constant 0 : i32
    %2 = arith.cmpi ne, %1, %c0_i32_0 : i32
    scf.if %2 {
      %cst_25 = arith.constant 0.000000e+00 : f32
      %60 = vector.broadcast %cst_25 : f32 to vector<1x256xf32>
      %c0_26 = arith.constant 0 : index
      %c0_27 = arith.constant 0 : index
      %61 = vector.load %arg7[%c0_26, %c0_27] : memref<1x256xf32, #tpu.memory_space<vmem>>, vector<1x256xf32>
      tpu.vector_store %arg7[%c0_26, %c0_27], %60 {strides = array<i32>} : memref<1x256xf32, #tpu.memory_space<vmem>>, vector<1x256xf32>,
      %cst_28 = arith.constant 0.000000e+00 : f32
      %62 = vector.broadcast %cst_28 : f32 to vector<1x256xf32>
      %c0_29 = arith.constant 0 : index
      %c0_30 = arith.constant 0 : index
      %63 = vector.load %arg8[%c0_29, %c0_30] : memref<1x256xf32, #tpu.memory_space<vmem>>, vector<1x256xf32>
      tpu.vector_store %arg8[%c0_29, %c0_30], %62 {strides = array<i32>} : memref<1x256xf32, #tpu.memory_space<vmem>>, vector<1x256xf32>,
    } else {
    }
    %c0 = arith.constant 0 : index
    %c0_1 = arith.constant 0 : index
    %c0_2 = arith.constant 0 : index
    %3 = vector.load %arg2[%c0, %c0_1, %c0_2] : memref<1x37x256xf32, #tpu.memory_space<vmem>>, vector<1x37x256xf32>
    %4 = vector.shape_cast %3 : vector<1x37x256xf32> to vector<37x256xf32>
    %c0_3 = arith.constant 0 : index
    %c0_4 = arith.constant 0 : index
    %c0_5 = arith.constant 0 : index
    %5 = vector.load %arg3[%c0_3, %c0_4, %c0_5] : memref<1x1x256xi32, #tpu.memory_space<vmem>>, vector<1x1x256xi32>
    %6 = vector.shape_cast %5 : vector<1x1x256xi32> to vector<1x256xi32>
    %c0_6 = arith.constant 0 : index
    %c0_7 = arith.constant 0 : index
    %7 = vector.load %arg4[%c0_6, %c0_7] : memref<37x1xf32, #tpu.memory_space<vmem>>, vector<37x1xf32>
    %8 = tpu.iota {dimensions = array<i32: 1>} : vector<1x256xi32>
    %c256_i32 = arith.constant 256 : i32
    %9 = arith.muli %arg1, %c256_i32 : i32
    %10 = vector.broadcast %9 : i32 to vector<1x256xi32>
    %11 = arith.addi %10, %8 : vector<1x256xi32>
    %c256_i32_8 = arith.constant 256 : i32
    %12 = vector.broadcast %c256_i32_8 : i32 to vector<1x256xi32>
    %13 = arith.cmpi slt, %11, %12 : vector<1x256xi32>
    %c0_i32_9 = arith.constant 0 : i32
    %14 = vector.broadcast %c0_i32_9 : i32 to vector<1x256xi32>
    %15 = arith.cmpi sgt, %6, %14 : vector<1x256xi32>
    %16 = arith.andi %15, %13 : vector<1x256xi1>
    %c1_i32 = arith.constant 1 : i32
    %17 = vector.broadcast %c1_i32 : i32 to vector<1x256xi32>
    %18 = arith.subi %6, %17 : vector<1x256xi32>
    %c0_i32_10 = arith.constant 0 : i32
    %19 = vector.broadcast %c0_i32_10 : i32 to vector<1x256xi32>
    %20 = arith.select %16, %18, %19 : vector<1x256xi1>, vector<1x256xi32>
    %cst = arith.constant 0.000000e+00 : f32
    %21 = vector.shape_cast %13 : vector<1x256xi1> to vector<1x256xi1>
    %22 = vector.broadcast %21 : vector<1x256xi1> to vector<37x256xi1>
    %23 = vector.broadcast %cst : f32 to vector<37x256xf32>
    %24 = arith.select %22, %4, %23 : vector<37x256xi1>, vector<37x256xf32>
    %cst_11 = arith.constant dense<0xFF800000> : vector<256xf32>
    %25 = vector.multi_reduction <maximumf>, %24, %cst_11 [0] : vector<37x256xf32> to vector<256xf32>
    %26 = vector.shape_cast %25 : vector<256xf32> to vector<1x256xf32>
    %27 = vector.broadcast %26 : vector<1x256xf32> to vector<37x256xf32>
    %28 = arith.subf %24, %27 : vector<37x256xf32>
    %29 = math.exp %28 : vector<37x256xf32>
    %cst_12 = arith.constant dense<0.000000e+00> : vector<256xf32>
    %30 = vector.multi_reduction <add>, %29, %cst_12 [0] : vector<37x256xf32> to vector<256xf32>
    %31 = vector.shape_cast %30 : vector<256xf32> to vector<1x256xf32>
    %32 = math.log %31 : vector<1x256xf32>
    %33 = arith.addf %26, %32 : vector<1x256xf32>
    %34 = tpu.iota {dimensions = array<i32: 0>} : vector<37x256xi32>
    %35 = vector.broadcast %20 : vector<1x256xi32> to vector<37x256xi32>
    %36 = arith.cmpi eq, %34, %35 : vector<37x256xi32>
    %37 = arith.extui %36 : vector<37x256xi1> to vector<37x256xi32>
    %38 = arith.sitofp %37 : vector<37x256xi32> to vector<37x256xf32>
    %39 = arith.mulf %24, %38 : vector<37x256xf32>
    %cst_13 = arith.constant dense<0.000000e+00> : vector<256xf32>
    %40 = vector.multi_reduction <add>, %39, %cst_13 [0] : vector<37x256xf32> to vector<256xf32>
    %41 = vector.shape_cast %40 : vector<256xf32> to vector<1x256xf32>
    %42 = vector.broadcast %7 : vector<37x1xf32> to vector<37x256xf32>
    %43 = arith.mulf %42, %38 : vector<37x256xf32>
    %cst_14 = arith.constant dense<0.000000e+00> : vector<256xf32>
    %44 = vector.multi_reduction <add>, %43, %cst_14 [0] : vector<37x256xf32> to vector<256xf32>
    %45 = vector.shape_cast %44 : vector<256xf32> to vector<1x256xf32>
    %46 = arith.extui %16 : vector<1x256xi1> to vector<1x256xi32>
    %47 = arith.sitofp %46 : vector<1x256xi32> to vector<1x256xf32>
    %c0_15 = arith.constant 0 : index
    %c0_16 = arith.constant 0 : index
    %48 = vector.load %arg7[%c0_15, %c0_16] : memref<1x256xf32, #tpu.memory_space<vmem>>, vector<1x256xf32>
    %49 = arith.subf %33, %41 : vector<1x256xf32>
    %50 = arith.mulf %45, %49 : vector<1x256xf32>
    %51 = arith.mulf %50, %47 : vector<1x256xf32>
    %52 = arith.addf %48, %51 : vector<1x256xf32>
    %c0_17 = arith.constant 0 : index
    %c0_18 = arith.constant 0 : index
    %53 = vector.load %arg7[%c0_17, %c0_18] : memref<1x256xf32, #tpu.memory_space<vmem>>, vector<1x256xf32>
    tpu.vector_store %arg7[%c0_17, %c0_18], %52 {strides = array<i32>} : memref<1x256xf32, #tpu.memory_space<vmem>>, vector<1x256xf32>,
    %c0_19 = arith.constant 0 : index
    %c0_20 = arith.constant 0 : index
    %54 = vector.load %arg8[%c0_19, %c0_20] : memref<1x256xf32, #tpu.memory_space<vmem>>, vector<1x256xf32>
    %55 = arith.addf %54, %47 : vector<1x256xf32>
    %c0_21 = arith.constant 0 : index
    %c0_22 = arith.constant 0 : index
    %56 = vector.load %arg8[%c0_21, %c0_22] : memref<1x256xf32, #tpu.memory_space<vmem>>, vector<1x256xf32>
    tpu.vector_store %arg8[%c0_21, %c0_22], %55 {strides = array<i32>} : memref<1x256xf32, #tpu.memory_space<vmem>>, vector<1x256xf32>,
    %c0_i32_23 = arith.constant 0 : i32
    %57 = arith.cmpi eq, %arg1, %c0_i32_23 : i32
    %58 = arith.extui %57 : i1 to i32
    %c0_i32_24 = arith.constant 0 : i32
    %59 = arith.cmpi ne, %58, %c0_i32_24 : i32
    scf.if %59 {
      %c0_25 = arith.constant 0 : index
      %c0_26 = arith.constant 0 : index
      %60 = vector.load %arg7[%c0_25, %c0_26] : memref<1x256xf32, #tpu.memory_space<vmem>>, vector<1x256xf32>
      %61 = vector.shape_cast %60 : vector<1x256xf32> to vector<1x1x256xf32>
      %cst_27 = arith.constant dense<0.000000e+00> : vector<1xf32>
      %62 = vector.multi_reduction <add>, %61, %cst_27 [1, 2] : vector<1x1x256xf32> to vector<1xf32>
      %63 = vector.shape_cast %62 : vector<1xf32> to vector<1x1x1xf32>
      %64 = vector.extract %63[0, 0, 0] : f32 from vector<1x1x1xf32>
      %65 = vector.broadcast %64 : f32 to vector<1x1x1xf32>
      %c0_28 = arith.constant 0 : index
      %c0_29 = arith.constant 0 : index
      %c0_30 = arith.constant 0 : index
      %66 = vector.load %arg5[%c0_28, %c0_29, %c0_30] : memref<1x1x1xf32, #tpu.memory_space<vmem>>, vector<1x1x1xf32>
      tpu.vector_store %arg5[%c0_28, %c0_29, %c0_30], %65 {strides = array<i32>} : memref<1x1x1xf32, #tpu.memory_space<vmem>>, vector<1x1x1xf32>,
      %c0_31 = arith.constant 0 : index
      %c0_32 = arith.constant 0 : index
      %67 = vector.load %arg8[%c0_31, %c0_32] : memref<1x256xf32, #tpu.memory_space<vmem>>, vector<1x256xf32>
      %68 = vector.shape_cast %67 : vector<1x256xf32> to vector<1x1x256xf32>
      %cst_33 = arith.constant dense<0.000000e+00> : vector<1xf32>
      %69 = vector.multi_reduction <add>, %68, %cst_33 [1, 2] : vector<1x1x256xf32> to vector<1xf32>
      %70 = vector.shape_cast %69 : vector<1xf32> to vector<1x1x1xf32>
      %71 = vector.extract %70[0, 0, 0] : f32 from vector<1x1x1xf32>
      %72 = vector.broadcast %71 : f32 to vector<1x1x1xf32>
      %c0_34 = arith.constant 0 : index
      %c0_35 = arith.constant 0 : index
      %c0_36 = arith.constant 0 : index
      %73 = vector.load %arg6[%c0_34, %c0_35, %c0_36] : memref<1x1x1xf32, #tpu.memory_space<vmem>>, vector<1x1x1xf32>
      tpu.vector_store %arg6[%c0_34, %c0_35, %c0_36], %72 {strides = array<i32>} : memref<1x1x1xf32, #tpu.memory_space<vmem>>, vector<1x1x1xf32>,
    } else {
    }
    return
  }
  func.func @transform_0(%arg0: i32, %arg1: i32) -> (i32, i32, i32) {
    %c0_i32 = arith.constant 0 : i32
    %c0_i32_0 = arith.constant 0 : i32
    return %arg0, %c0_i32, %arg1 : i32, i32, i32
  }
  func.func @transform_1(%arg0: i32, %arg1: i32) -> (i32, i32, i32) {
    %c0_i32 = arith.constant 0 : i32
    %c0_i32_0 = arith.constant 0 : i32
    return %arg0, %c0_i32, %arg1 : i32, i32, i32
  }
  func.func @transform_2(%arg0: i32, %arg1: i32) -> (i32, i32) {
    %c0_i32 = arith.constant 0 : i32
    %c0_i32_0 = arith.constant 0 : i32
    %c0_i32_1 = arith.constant 0 : i32
    return %c0_i32, %c0_i32_0 : i32, i32
  }
  func.func @transform_3(%arg0: i32, %arg1: i32) -> (i32, i32, i32) {
    %c0_i32 = arith.constant 0 : i32
    %c0_i32_0 = arith.constant 0 : i32
    %c0_i32_1 = arith.constant 0 : i32
    return %arg0, %c0_i32, %c0_i32_0 : i32, i32, i32
  }
  func.func @transform_4(%arg0: i32, %arg1: i32) -> (i32, i32, i32) {
    %c0_i32 = arith.constant 0 : i32
    %c0_i32_0 = arith.constant 0 : i32
    %c0_i32_1 = arith.constant 0 : i32
    return %arg0, %c0_i32, %c0_i32_0 : i32, i32, i32
  }
}

module attributes {stable_mosaic.version = 11 : i64} {
  func.func @_ce_kernel(%arg0: i32, %arg1: i32, %arg2: memref<1x37x64xf32, #tpu.memory_space<vmem>>, %arg3: memref<1x1x64xi32, #tpu.memory_space<vmem>>, %arg4: memref<37x1xf32, #tpu.memory_space<vmem>>, %arg5: memref<1x1x1xf32, #tpu.memory_space<vmem>>, %arg6: memref<1x1x1xf32, #tpu.memory_space<vmem>>, %arg7: memref<1x64xf32, #tpu.memory_space<vmem>>, %arg8: memref<1x64xf32, #tpu.memory_space<vmem>>) attributes {dimension_semantics = [#tpu.dimension_semantics<parallel>, #tpu.dimension_semantics<arbitrary>], iteration_bounds = array<i64: 2, 1>, scalar_prefetch = 0 : i64, scratch_operands = 2 : i64, tpu.core_type = #tpu.core_type<tc>, window_params = [{transform_indices = @transform_0, window_bounds = array<i64: 1, 37, 64>}, {transform_indices = @transform_1, window_bounds = array<i64: 1, 1, 64>}, {pipeline_mode = #tpu.pipeline_mode<synchronous>, transform_indices = @transform_2, window_bounds = array<i64: 37, 1>}, {transform_indices = @transform_3, window_bounds = array<i64: 1, 1, 1>}, {transform_indices = @transform_4, window_bounds = array<i64: 1, 1, 1>}]} {
    %c0_i32 = arith.constant 0 : i32
    %0 = arith.cmpi eq, %arg1, %c0_i32 : i32
    %1 = arith.extui %0 : i1 to i32
    %c0_i32_0 = arith.constant 0 : i32
    %2 = arith.cmpi ne, %1, %c0_i32_0 : i32
    scf.if %2 {
      %cst_25 = arith.constant 0.000000e+00 : f32
      %60 = vector.broadcast %cst_25 : f32 to vector<1x64xf32>
      %c0_26 = arith.constant 0 : index
      %c0_27 = arith.constant 0 : index
      %61 = vector.load %arg7[%c0_26, %c0_27] : memref<1x64xf32, #tpu.memory_space<vmem>>, vector<1x64xf32>
      tpu.vector_store %arg7[%c0_26, %c0_27], %60 {strides = array<i32>} : memref<1x64xf32, #tpu.memory_space<vmem>>, vector<1x64xf32>,
      %cst_28 = arith.constant 0.000000e+00 : f32
      %62 = vector.broadcast %cst_28 : f32 to vector<1x64xf32>
      %c0_29 = arith.constant 0 : index
      %c0_30 = arith.constant 0 : index
      %63 = vector.load %arg8[%c0_29, %c0_30] : memref<1x64xf32, #tpu.memory_space<vmem>>, vector<1x64xf32>
      tpu.vector_store %arg8[%c0_29, %c0_30], %62 {strides = array<i32>} : memref<1x64xf32, #tpu.memory_space<vmem>>, vector<1x64xf32>,
    } else {
    }
    %c0 = arith.constant 0 : index
    %c0_1 = arith.constant 0 : index
    %c0_2 = arith.constant 0 : index
    %3 = vector.load %arg2[%c0, %c0_1, %c0_2] : memref<1x37x64xf32, #tpu.memory_space<vmem>>, vector<1x37x64xf32>
    %4 = vector.shape_cast %3 : vector<1x37x64xf32> to vector<37x64xf32>
    %c0_3 = arith.constant 0 : index
    %c0_4 = arith.constant 0 : index
    %c0_5 = arith.constant 0 : index
    %5 = vector.load %arg3[%c0_3, %c0_4, %c0_5] : memref<1x1x64xi32, #tpu.memory_space<vmem>>, vector<1x1x64xi32>
    %6 = vector.shape_cast %5 : vector<1x1x64xi32> to vector<1x64xi32>
    %c0_6 = arith.constant 0 : index
    %c0_7 = arith.constant 0 : index
    %7 = vector.load %arg4[%c0_6, %c0_7] : memref<37x1xf32, #tpu.memory_space<vmem>>, vector<37x1xf32>
    %8 = tpu.iota {dimensions = array<i32: 1>} : vector<1x64xi32>
    %c64_i32 = arith.constant 64 : i32
    %9 = arith.muli %arg1, %c64_i32 : i32
    %10 = vector.broadcast %9 : i32 to vector<1x64xi32>
    %11 = arith.addi %10, %8 : vector<1x64xi32>
    %c64_i32_8 = arith.constant 64 : i32
    %12 = vector.broadcast %c64_i32_8 : i32 to vector<1x64xi32>
    %13 = arith.cmpi slt, %11, %12 : vector<1x64xi32>
    %c0_i32_9 = arith.constant 0 : i32
    %14 = vector.broadcast %c0_i32_9 : i32 to vector<1x64xi32>
    %15 = arith.cmpi sgt, %6, %14 : vector<1x64xi32>
    %16 = arith.andi %15, %13 : vector<1x64xi1>
    %c1_i32 = arith.constant 1 : i32
    %17 = vector.broadcast %c1_i32 : i32 to vector<1x64xi32>
    %18 = arith.subi %6, %17 : vector<1x64xi32>
    %c0_i32_10 = arith.constant 0 : i32
    %19 = vector.broadcast %c0_i32_10 : i32 to vector<1x64xi32>
    %20 = arith.select %16, %18, %19 : vector<1x64xi1>, vector<1x64xi32>
    %cst = arith.constant 0.000000e+00 : f32
    %21 = vector.shape_cast %13 : vector<1x64xi1> to vector<1x64xi1>
    %22 = vector.broadcast %21 : vector<1x64xi1> to vector<37x64xi1>
    %23 = vector.broadcast %cst : f32 to vector<37x64xf32>
    %24 = arith.select %22, %4, %23 : vector<37x64xi1>, vector<37x64xf32>
    %cst_11 = arith.constant dense<0xFF800000> : vector<64xf32>
    %25 = vector.multi_reduction <maximumf>, %24, %cst_11 [0] : vector<37x64xf32> to vector<64xf32>
    %26 = vector.shape_cast %25 : vector<64xf32> to vector<1x64xf32>
    %27 = vector.broadcast %26 : vector<1x64xf32> to vector<37x64xf32>
    %28 = arith.subf %24, %27 : vector<37x64xf32>
    %29 = math.exp %28 : vector<37x64xf32>
    %cst_12 = arith.constant dense<0.000000e+00> : vector<64xf32>
    %30 = vector.multi_reduction <add>, %29, %cst_12 [0] : vector<37x64xf32> to vector<64xf32>
    %31 = vector.shape_cast %30 : vector<64xf32> to vector<1x64xf32>
    %32 = math.log %31 : vector<1x64xf32>
    %33 = arith.addf %26, %32 : vector<1x64xf32>
    %34 = tpu.iota {dimensions = array<i32: 0>} : vector<37x64xi32>
    %35 = vector.broadcast %20 : vector<1x64xi32> to vector<37x64xi32>
    %36 = arith.cmpi eq, %34, %35 : vector<37x64xi32>
    %37 = arith.extui %36 : vector<37x64xi1> to vector<37x64xi32>
    %38 = arith.sitofp %37 : vector<37x64xi32> to vector<37x64xf32>
    %39 = arith.mulf %24, %38 : vector<37x64xf32>
    %cst_13 = arith.constant dense<0.000000e+00> : vector<64xf32>
    %40 = vector.multi_reduction <add>, %39, %cst_13 [0] : vector<37x64xf32> to vector<64xf32>
    %41 = vector.shape_cast %40 : vector<64xf32> to vector<1x64xf32>
    %42 = vector.broadcast %7 : vector<37x1xf32> to vector<37x64xf32>
    %43 = arith.mulf %42, %38 : vector<37x64xf32>
    %cst_14 = arith.constant dense<0.000000e+00> : vector<64xf32>
    %44 = vector.multi_reduction <add>, %43, %cst_14 [0] : vector<37x64xf32> to vector<64xf32>
    %45 = vector.shape_cast %44 : vector<64xf32> to vector<1x64xf32>
    %46 = arith.extui %16 : vector<1x64xi1> to vector<1x64xi32>
    %47 = arith.sitofp %46 : vector<1x64xi32> to vector<1x64xf32>
    %c0_15 = arith.constant 0 : index
    %c0_16 = arith.constant 0 : index
    %48 = vector.load %arg7[%c0_15, %c0_16] : memref<1x64xf32, #tpu.memory_space<vmem>>, vector<1x64xf32>
    %49 = arith.subf %33, %41 : vector<1x64xf32>
    %50 = arith.mulf %45, %49 : vector<1x64xf32>
    %51 = arith.mulf %50, %47 : vector<1x64xf32>
    %52 = arith.addf %48, %51 : vector<1x64xf32>
    %c0_17 = arith.constant 0 : index
    %c0_18 = arith.constant 0 : index
    %53 = vector.load %arg7[%c0_17, %c0_18] : memref<1x64xf32, #tpu.memory_space<vmem>>, vector<1x64xf32>
    tpu.vector_store %arg7[%c0_17, %c0_18], %52 {strides = array<i32>} : memref<1x64xf32, #tpu.memory_space<vmem>>, vector<1x64xf32>,
    %c0_19 = arith.constant 0 : index
    %c0_20 = arith.constant 0 : index
    %54 = vector.load %arg8[%c0_19, %c0_20] : memref<1x64xf32, #tpu.memory_space<vmem>>, vector<1x64xf32>
    %55 = arith.addf %54, %47 : vector<1x64xf32>
    %c0_21 = arith.constant 0 : index
    %c0_22 = arith.constant 0 : index
    %56 = vector.load %arg8[%c0_21, %c0_22] : memref<1x64xf32, #tpu.memory_space<vmem>>, vector<1x64xf32>
    tpu.vector_store %arg8[%c0_21, %c0_22], %55 {strides = array<i32>} : memref<1x64xf32, #tpu.memory_space<vmem>>, vector<1x64xf32>,
    %c0_i32_23 = arith.constant 0 : i32
    %57 = arith.cmpi eq, %arg1, %c0_i32_23 : i32
    %58 = arith.extui %57 : i1 to i32
    %c0_i32_24 = arith.constant 0 : i32
    %59 = arith.cmpi ne, %58, %c0_i32_24 : i32
    scf.if %59 {
      %c0_25 = arith.constant 0 : index
      %c0_26 = arith.constant 0 : index
      %60 = vector.load %arg7[%c0_25, %c0_26] : memref<1x64xf32, #tpu.memory_space<vmem>>, vector<1x64xf32>
      %61 = vector.shape_cast %60 : vector<1x64xf32> to vector<1x1x64xf32>
      %cst_27 = arith.constant dense<0.000000e+00> : vector<1xf32>
      %62 = vector.multi_reduction <add>, %61, %cst_27 [1, 2] : vector<1x1x64xf32> to vector<1xf32>
      %63 = vector.shape_cast %62 : vector<1xf32> to vector<1x1x1xf32>
      %64 = vector.extract %63[0, 0, 0] : f32 from vector<1x1x1xf32>
      %65 = vector.broadcast %64 : f32 to vector<1x1x1xf32>
      %c0_28 = arith.constant 0 : index
      %c0_29 = arith.constant 0 : index
      %c0_30 = arith.constant 0 : index
      %66 = vector.load %arg5[%c0_28, %c0_29, %c0_30] : memref<1x1x1xf32, #tpu.memory_space<vmem>>, vector<1x1x1xf32>
      tpu.vector_store %arg5[%c0_28, %c0_29, %c0_30], %65 {strides = array<i32>} : memref<1x1x1xf32, #tpu.memory_space<vmem>>, vector<1x1x1xf32>,
      %c0_31 = arith.constant 0 : index
      %c0_32 = arith.constant 0 : index
      %67 = vector.load %arg8[%c0_31, %c0_32] : memref<1x64xf32, #tpu.memory_space<vmem>>, vector<1x64xf32>
      %68 = vector.shape_cast %67 : vector<1x64xf32> to vector<1x1x64xf32>
      %cst_33 = arith.constant dense<0.000000e+00> : vector<1xf32>
      %69 = vector.multi_reduction <add>, %68, %cst_33 [1, 2] : vector<1x1x64xf32> to vector<1xf32>
      %70 = vector.shape_cast %69 : vector<1xf32> to vector<1x1x1xf32>
      %71 = vector.extract %70[0, 0, 0] : f32 from vector<1x1x1xf32>
      %72 = vector.broadcast %71 : f32 to vector<1x1x1xf32>
      %c0_34 = arith.constant 0 : index
      %c0_35 = arith.constant 0 : index
      %c0_36 = arith.constant 0 : index
      %73 = vector.load %arg6[%c0_34, %c0_35, %c0_36] : memref<1x1x1xf32, #tpu.memory_space<vmem>>, vector<1x1x1xf32>
      tpu.vector_store %arg6[%c0_34, %c0_35, %c0_36], %72 {strides = array<i32>} : memref<1x1x1xf32, #tpu.memory_space<vmem>>, vector<1x1x1xf32>,
    } else {
    }
    return
  }
  func.func @transform_0(%arg0: i32, %arg1: i32) -> (i32, i32, i32) {
    %c0_i32 = arith.constant 0 : i32
    %c0_i32_0 = arith.constant 0 : i32
    return %arg0, %c0_i32, %arg1 : i32, i32, i32
  }
  func.func @transform_1(%arg0: i32, %arg1: i32) -> (i32, i32, i32) {
    %c0_i32 = arith.constant 0 : i32
    %c0_i32_0 = arith.constant 0 : i32
    return %arg0, %c0_i32, %arg1 : i32, i32, i32
  }
  func.func @transform_2(%arg0: i32, %arg1: i32) -> (i32, i32) {
    %c0_i32 = arith.constant 0 : i32
    %c0_i32_0 = arith.constant 0 : i32
    %c0_i32_1 = arith.constant 0 : i32
    return %c0_i32, %c0_i32_0 : i32, i32
  }
  func.func @transform_3(%arg0: i32, %arg1: i32) -> (i32, i32, i32) {
    %c0_i32 = arith.constant 0 : i32
    %c0_i32_0 = arith.constant 0 : i32
    %c0_i32_1 = arith.constant 0 : i32
    return %arg0, %c0_i32, %c0_i32_0 : i32, i32, i32
  }
  func.func @transform_4(%arg0: i32, %arg1: i32) -> (i32, i32, i32) {
    %c0_i32 = arith.constant 0 : i32
    %c0_i32_0 = arith.constant 0 : i32
    %c0_i32_1 = arith.constant 0 : i32
    return %arg0, %c0_i32, %c0_i32_0 : i32, i32, i32
  }
}

</mosaic_0001>

<llo_original>
// kernel: cross_entropy_loss_2d.2
$region0: #{cross_entropy_loss_2d.2}
  #allocation0 [shape = 'u32[]', space=smem, size = 0x4, offset = 0x4, fixed_abs, tag = 'smem constant byte address 0x4 - core index']
  #allocation1 [shape = 'u32[144,128]{1,0:T(1,128)}', space=vmem, size = 0x12000, scoped, tag = 'internal scratch']
  #allocation2 [shape = 'f32[1,256]{1,0:T(1,128)}', space=vmem, size = 0x400, scoped, tag = 'scratch operand']
  #allocation3 [shape = 'f32[1,256]{1,0:T(1,128)}', space=vmem, size = 0x400, scoped, tag = 'scratch operand']
  %s0 = inlined_call_operand.vmem [shape: f32[2,37,256], index: 0, kind: input, shape index: {}]
  %s1 = inlined_call_operand.vmem [shape: s32[2,1,256], index: 1, kind: input, shape index: {}]
  %s2 = inlined_call_operand.vmem [shape: f32[37,1], index: 2, kind: input, shape index: {}]
  %s3 = inlined_call_operand.vmem [shape: f32[2,1,1], index: 3, kind: output, shape index: {0}]
  %s4 = inlined_call_operand.vmem [shape: f32[2,1,1], index: 4, kind: output, shape index: {1}]
  %5 = xla_tuple %s3, %s4
  %s6 = sld [smem:[#allocation0]]
  $region61: #{cross_entropy_loss_2d.2} parent=0
    _
  %s8 = ssub.s32 1, %s6
  %s9 = scalar_select 0, %s8, %s6
  loop: start=0, step=1, limit=4
  $region2: #{cross_entropy_loss_2d.2} parent=0 // loop_pre_header
    _
  $region3: #{cross_entropy_loss_2d.2} parent=0 // loop_header
    %s11 = sphi 0, %s15
    %p12 = scmp.ge.s32.totalorder %s11, 4
    %s18 = sphi 0, %s30
    %s19 = sphi 0, %s26
    %s20 = sphi 0, %s18
    %s21 = sphi 0, %s19
    %s22 = sphi 0, %s20
    %s23 = sphi 0, %s21
    %s35 = sphi 0, %s37
    %s38 = sphi 0, %s35
    %s39 = sphi 0, %s38
    %s55 = sphi 0, %s39
    %s63 = sphi 0, %s65
    %s66 = sphi 0, %s63
    %s67 = sphi 0, %s66
    %s83 = sphi 0, %s67
    %s87 = sphi 0, %s87
    %s89 = sphi 0, %s87
    %s90 = sphi 0, %s89
    %s104 = sphi 0, %s90
    %s110 = sphi 0, %s112
    %s113 = sphi 0, %s110
    %s114 = sphi 0, %s113
    %s130 = sphi 0, %s114
    %s136 = sphi 0, %s138
    %s139 = sphi 0, %s136
    %s140 = sphi 0, %s139
    %s156 = sphi 0, %s140
  $region4: #{cross_entropy_loss_2d.2} parent=0 // loop_header_branch
    %14 = sbr.rel (%p12) target = $region8
  $region5: #{cross_entropy_loss_2d.2} parent=0 // loop_body
    %s16 = ssub.s32 %s11, 1
    %s17 = ssub.s32 %s11, 2
    %s24 = sadd.s32 1, %s19
    %p25 = scmp.ge.s32.totalorder %s24, 1
    %s26 = scalar_select %p25, 0, %s24
    %s27 = sadd.s32 1, %s18
    %s28 = scalar_select %p25, %s27, %s18
    %p29 = scmp.ge.s32.totalorder %s28, 2
    %s30 = scalar_select %p29, 0, %s28
    %s31 = ssub.s32 %s18, %s30
    %s32 = ssub.s32 %s19, %s26
    %s33 = sor.u32 %s31, %s32
    %p34 = scmp.eq.s32.totalorder %s33, 0
    %s36 = sadd.s32 %s35, 1
    %s37 = scalar_select %p34, %s35, %s36
    %p40 = pneg %p34
    %p41 = scmp.eq.s32.totalorder %s11, 1
    %p42 = por %p40, %p41
    %p43 = scmp.ne.s32.totalorder %s35, %s38
    %p44 = scmp.eq.s32.totalorder %s11, 0
    %p45 = por %p43, %p44
    %p46 = scmp.ne.s32.totalorder %s35, %s38
    %p47 = scmp.eq.s32.totalorder %s16, 1
    %p48 = por %p46, %p47
    %p49 = scmp.ne.s32.totalorder %s38, %s39
    %p50 = scmp.eq.s32.totalorder %s16, 0
    %p51 = por %p49, %p50
    %p52 = scmp.ne.s32.totalorder %s38, %s39
    %p53 = scmp.eq.s32.totalorder %s17, 1
    %p54 = por %p52, %p53
    %p56 = scmp.ne.s32.totalorder %s39, %s55
    %p57 = scmp.eq.s32.totalorder %s17, 0
    %p58 = por %p56, %p57
    %s59 = ssub.s32 %s18, %s30
    %s60 = ssub.s32 %s19, %s26
    %s61 = sor.u32 %s59, %s60
    %p62 = scmp.eq.s32.totalorder %s61, 0
    %s64 = sadd.s32 %s63, 1
    %s65 = scalar_select %p62, %s63, %s64
    %p68 = pneg %p62
    %p69 = scmp.eq.s32.totalorder %s11, 1
    %p70 = por %p68, %p69
    %p71 = scmp.ne.s32.totalorder %s63, %s66
    %p72 = scmp.eq.s32.totalorder %s11, 0
    %p73 = por %p71, %p72
    %p74 = scmp.ne.s32.totalorder %s63, %s66
    %p75 = scmp.eq.s32.totalorder %s16, 1
    %p76 = por %p74, %p75
    %p77 = scmp.ne.s32.totalorder %s66, %s67
    %p78 = scmp.eq.s32.totalorder %s16, 0
    %p79 = por %p77, %p78
    %p80 = scmp.ne.s32.totalorder %s66, %s67
    %p81 = scmp.eq.s32.totalorder %s17, 1
    %p82 = por %p80, %p81
    %p84 = scmp.ne.s32.totalorder %s67, %s83
    %p85 = scmp.eq.s32.totalorder %s17, 0
    %p86 = por %p84, %p85
    %s88 = sadd.s32 %s87, 1
    %p91 = scmp.eq.s32.totalorder %s11, 1
    %p92 = scmp.ne.s32.totalorder %s87, %s89
    %p93 = scmp.eq.s32.totalorder %s11, 0
    %p94 = por %p92, %p93
    %p95 = scmp.ne.s32.totalorder %s87, %s89
    %p96 = scmp.eq.s32.totalorder %s16, 1
    %p97 = por %p95, %p96
    %p98 = scmp.ne.s32.totalorder %s89, %s90
    %p99 = scmp.eq.s32.totalorder %s16, 0
    %p100 = por %p98, %p99
    %p101 = scmp.ne.s32.totalorder %s89, %s90
    %p102 = scmp.eq.s32.totalorder %s17, 1
    %p103 = por %p101, %p102
    %p105 = scmp.ne.s32.totalorder %s90, %s104
    %p106 = scmp.eq.s32.totalorder %s17, 0
    %p107 = por %p105, %p106
    %s108 = ssub.s32 %s18, %s30
    %p109 = scmp.eq.s32.totalorder %s108, 0
    %s111 = sadd.s32 %s110, 1
    %s112 = scalar_select %p109, %s110, %s111
    %p115 = pneg %p109
    %p116 = scmp.eq.s32.totalorder %s11, 1
    %p117 = por %p115, %p116
    %p118 = scmp.ne.s32.totalorder %s110, %s113
    %p119 = scmp.eq.s32.totalorder %s11, 0
    %p120 = por %p118, %p119
    %p121 = scmp.ne.s32.totalorder %s110, %s113
    %p122 = scmp.eq.s32.totalorder %s16, 1
    %p123 = por %p121, %p122
    %p124 = scmp.ne.s32.totalorder %s113, %s114
    %p125 = scmp.eq.s32.totalorder %s16, 0
    %p126 = por %p124, %p125
    %p127 = scmp.ne.s32.totalorder %s113, %s114
    %p128 = scmp.eq.s32.totalorder %s17, 1
    %p129 = por %p127, %p128
    %p131 = scmp.ne.s32.totalorder %s114, %s130
    %p132 = scmp.eq.s32.totalorder %s17, 0
    %p133 = por %p131, %p132
    %s134 = ssub.s32 %s18, %s30
    %p135 = scmp.eq.s32.totalorder %s134, 0
    %s137 = sadd.s32 %s136, 1
    %s138 = scalar_select %p135, %s136, %s137
    %p141 = pneg %p135
    %p142 = scmp.eq.s32.totalorder %s11, 1
    %p143 = por %p141, %p142
    %p144 = scmp.ne.s32.totalorder %s136, %s139
    %p145 = scmp.eq.s32.totalorder %s11, 0
    %p146 = por %p144, %p145
    %p147 = scmp.ne.s32.totalorder %s136, %s139
    %p148 = scmp.eq.s32.totalorder %s16, 1
    %p149 = por %p147, %p148
    %p150 = scmp.ne.s32.totalorder %s139, %s140
    %p151 = scmp.eq.s32.totalorder %s16, 0
    %p152 = por %p150, %p151
    %p153 = scmp.ne.s32.totalorder %s139, %s140
    %p154 = scmp.eq.s32.totalorder %s17, 1
    %p155 = por %p153, %p154
    %p157 = scmp.ne.s32.totalorder %s140, %s156
    %p158 = scmp.eq.s32.totalorder %s17, 0
    %p159 = por %p157, %p158
    %p160 = scmp.le.s32.totalorder 1, %s11
    %p161 = scmp.lt.s32.totalorder %s11, 3
    %p162 = pnand %p160, %p161
    %p163 = pneg %p162
    // Predicated region
    $region9: #{cross_entropy_loss_2d.2} parent=5 // pred_check
      _
    $region10: #{cross_entropy_loss_2d.2} parent=5 // pred_check_branch
      %165 = sbr.rel (%p162) target = $region12
    $region11: #{cross_entropy_loss_2d.2} parent=5 // pred_region
      %s166 = ssub.s32 %s11, 1
      // Predicated region
      $region13: #{cross_entropy_loss_2d.2} parent=11 // pred_check
        %p167 = pneg %p100
      $region14: #{cross_entropy_loss_2d.2} parent=11 // pred_check_branch
        %169 = sbr.rel (%p167) target = $region16
      $region15: #{cross_entropy_loss_2d.2} parent=11 // pred_region
        _
      $region16: #{cross_entropy_loss_2d.2} parent=11 // pred_fallthru
        _
    $region12: #{cross_entropy_loss_2d.2} parent=5 // pred_fallthru
      _
    %p170 = scmp.lt.s32.totalorder %s11, 2
    // Predicated region
    $region17: #{cross_entropy_loss_2d.2} parent=5 // pred_check
      %p171 = pneg %p170
    $region18: #{cross_entropy_loss_2d.2} parent=5 // pred_check_branch
      %173 = sbr.rel (%p171) target = $region20
    $region19: #{cross_entropy_loss_2d.2} parent=5 // pred_region
      // Predicated region
      $region21: #{cross_entropy_loss_2d.2} parent=19 // pred_check
        %p174 = pneg %p45
      $region22: #{cross_entropy_loss_2d.2} parent=19 // pred_check_branch
        %176 = sbr.rel (%p174) target = $region24
      $region23: #{cross_entropy_loss_2d.2} parent=19 // pred_region
        %s177 = smul.u32 2, %s19
        %p178 = scmp.lt.s32.totalorder %s18, 1
        %s179 = scalar_select %p178, %s18, 1
        %p180 = scmp.lt.s32.totalorder %s177, 1
        %s181 = scalar_select %p180, %s177, 1
        %s182 = smul.addr %s179, 10
        %s183 = sadd.s32 %s181, %s182
        %s184 = smul.addr %s183, 8
        %s185 = scalar_lea.vmem %s0, %s184
        %s186 = smul.u32 2, %s19
      $region24: #{cross_entropy_loss_2d.2} parent=19 // pred_fallthru
        _
      // Predicated region
      $region25: #{cross_entropy_loss_2d.2} parent=19 // pred_check
        %p187 = pneg %p73
      $region26: #{cross_entropy_loss_2d.2} parent=19 // pred_check_branch
        %189 = sbr.rel (%p187) target = $region28
      $region27: #{cross_entropy_loss_2d.2} parent=19 // pred_region
        %s190 = smul.u32 2, %s19
        %p191 = scmp.lt.s32.totalorder %s18, 1
        %s192 = scalar_select %p191, %s18, 1
        %p193 = scmp.lt.s32.totalorder %s190, 1
        %s194 = scalar_select %p193, %s190, 1
        %s195 = smul.addr %s192, 2
        %s196 = sadd.s32 %s194, %s195
        %s197 = scalar_lea.vmem %s1, %s196
        %s198 = smul.u32 2, %s19
      $region28: #{cross_entropy_loss_2d.2} parent=19 // pred_fallthru
        _
    $region20: #{cross_entropy_loss_2d.2} parent=5 // pred_fallthru
      _
    %p199 = scmp.le.s32.totalorder 1, %s11
    %p200 = scmp.lt.s32.totalorder %s11, 3
    %p201 = pnand %p199, %p200
    %p202 = pneg %p201
    // Predicated region
    $region29: #{cross_entropy_loss_2d.2} parent=5 // pred_check
      _
    $region30: #{cross_entropy_loss_2d.2} parent=5 // pred_check_branch
      %204 = sbr.rel (%p201) target = $region32
    $region31: #{cross_entropy_loss_2d.2} parent=5 // pred_region
      %s205 = ssub.s32 %s11, 1
      %s206 = smul.u32 2, %s21
      %p207 = scmp.lt.s32.totalorder %s20, 1
      %s208 = scalar_select %p207, %s20, 1
      %p209 = scmp.lt.s32.totalorder %s206, 1
      %s210 = scalar_select %p209, %s206, 1
      %s211 = smul.addr %s208, 10
      %s212 = sadd.s32 %s210, %s211
      %s213 = smul.addr %s212, 8
      %s214 = scalar_lea.vmem %s0, %s213
      %p215 = pneg %p51
      %p216 = pneg %p48
      %s217 = smul.u32 2, %s21
      %p218 = scmp.lt.s32.totalorder %s20, 1
      %s219 = scalar_select %p218, %s20, 1
      %p220 = scmp.lt.s32.totalorder %s217, 1
      %s221 = scalar_select %p220, %s217, 1
      %s222 = smul.addr %s219, 2
      %s223 = sadd.s32 %s221, %s222
      %s224 = scalar_lea.vmem %s1, %s223
      %p225 = pneg %p79
      %p226 = pneg %p76
      %p227 = pneg %p100
      %p228 = pneg %p97
      %p229 = pneg %p126
      %p230 = pneg %p123
      %p231 = scmp.lt.s32.totalorder %s20, 1
      %s232 = scalar_select %p231, %s20, 1
      %s233 = scalar_lea.vmem %s3, %s232
      %p234 = pneg %p152
      %p235 = pneg %p149
      %p236 = scmp.lt.s32.totalorder %s20, 1
      %s237 = scalar_select %p236, %s20, 1
      %s238 = scalar_lea.vmem %s4, %s237
      %s239 = smul.u32 2, %s21
      %p240 = scmp.lt.s32.totalorder %s20, 1
      %s241 = scalar_select %p240, %s20, 1
      %p242 = scmp.lt.s32.totalorder %s239, 1
      %s243 = scalar_select %p242, %s239, 1
      %s244 = smul.addr %s241, 10
      %s245 = sadd.s32 %s243, %s244
      %s246 = smul.addr %s245, 8
      %s247 = scalar_lea.vmem %s0, %s246
      %s248 = smul.u32 2, %s21
      %s249 = smul.u32 2, %s21
      %p250 = scmp.lt.s32.totalorder %s20, 1
      %s251 = scalar_select %p250, %s20, 1
      %p252 = scmp.lt.s32.totalorder %s249, 1
      %s253 = scalar_select %p252, %s249, 1
      %s254 = smul.addr %s251, 2
      %s255 = sadd.s32 %s253, %s254
      %s256 = scalar_lea.vmem %s1, %s255
      %s257 = smul.u32 2, %s21
      %p258 = scmp.lt.s32.totalorder %s20, 1
      %s259 = scalar_select %p258, %s20, 1
      %s260 = scalar_lea.vmem %s3, %s259
      %p261 = scmp.lt.s32.totalorder %s20, 1
      %s262 = scalar_select %p261, %s20, 1
      %s263 = scalar_lea.vmem %s4, %s262
      %p264 = scmp.eq.s32.totalorder %s21, 0
      // Predicated region
      $region33: #{cross_entropy_loss_2d.2} parent=31 // pred_check
        %p265 = pneg %p264
      $region34: #{cross_entropy_loss_2d.2} parent=31 // pred_check_branch
        %267 = sbr.rel (%p265) target = $region36
      $region35: #{cross_entropy_loss_2d.2} parent=31 // pred_region
        %v268 = vlaneseq
        %vm269 = vcmp.ge.s32.totalorder %v268, 0
        %vm270 = vcmp.lt.s32.totalorder %v268, 256
        %vm271 = vmand %vm269, %vm270
        %272 = vst.msk [vmem:[#allocation2] sm:$0x3] %vm271, 0.0
        %273 = vst.msk [vmem:[#allocation3] sm:$0x3] %vm271, 0.0
      $region36: #{cross_entropy_loss_2d.2} parent=31 // pred_fallthru
        _
      %v274 = vld [vmem:[%s247] sm:$0xff]
      %v275 = vld [vmem:[%s247 + $0x8] sm:$0xff]
      %v276 = vld [vmem:[%s247 + $0x10] sm:$0xff]
      %v277 = vld [vmem:[%s247 + $0x18] sm:$0xff]
      %v278 = vld [vmem:[%s247 + $0x20] sm:$0xff]
      %v279 = vld [vmem:[%s247 + $0x28] sm:$0xff]
      %v280 = vld [vmem:[%s247 + $0x30] sm:$0xff]
      %v281 = vld [vmem:[%s247 + $0x38] sm:$0xff]
      %v282 = vld [vmem:[%s247 + $0x40] sm:$0x1f]
      %v283 = vld [vmem:[%s247 + $0x48] sm:$0x1f]
      %v284 = vld [vmem:[%s256] sm:$0x3]
      %v285 = vld [vmem:[%s2] sm:$0xff]
      %v286 = vld [vmem:[%s2 + $0x8] sm:$0xff]
      %v287 = vld [vmem:[%s2 + $0x10] sm:$0xff]
      %v288 = vld [vmem:[%s2 + $0x18] sm:$0xff]
      %v289 = vld [vmem:[%s2 + $0x20] sm:$0x1f]
      %v290 = vlaneseq
      %v291 = vand.u32 %v290, 127
      %v292 = vadd.s32 %v291, 128
      %s293 = smul.u32 %s21, 256
      %v294 = vstv %s293
      %v295 = vadd.s32 %v294, %v291
      %v296 = vadd.s32 %v294, %v292
      %vm297 = vcmp.lt.s32.totalorder %v295, 256
      %vm298 = vcmp.lt.s32.totalorder %v296, 256
      %vm299 = vcmp.gt.s32.totalorder %v284, 0
      %v300 = vsel %vm297, 1, 0
      %v301 = vsel %vm298, 1, 0
      %v302 = vcombine.low %v300, %v301
      %v304 = vunpack.c.l.s4 1966171168
      %v305 = vunpack.c.0.s8 %v304
      %v306 = vlaneseq
      %v307 = vshrl.u32 %v306, 7
      %v308 = vsub.s32 %v305, %v307
      %v309 = vrot.slane %v302, %v308
      %v311 = vunpack.c.l.s4 1966171168
      %v312 = vunpack.c.0.s8 %v311
      %v313 = vlaneseq
      %v314 = vshrl.u32 %v313, 7
      %v315 = vsub.s32 %v312, %v314
      %v316 = vrot.slane %v309, %v315
      %vm317 = vcmp.ne.s32.totalorder %v316, 0
      %vm318 = vmand %vm299, %vm317
      %v319 = vsub.s32 %v284, 1
      %v320 = vsel %vm318, %v319, 0
      %vm321 = vcmp.eq.s32.totalorder %v300, 1
      %vm322 = vcmp.eq.s32.totalorder %v301, 1
      %v323 = vsel %vm321, %v274, 0.0
      %v324 = vsel %vm322, %v275, 0.0
      %v325 = vsel %vm321, %v276, 0.0
      %v326 = vsel %vm322, %v277, 0.0
      %v327 = vsel %vm321, %v278, 0.0
      %v328 = vsel %vm322, %v279, 0.0
      %v329 = vsel %vm321, %v280, 0.0
      %v330 = vsel %vm322, %v281, 0.0
      %v331 = vsel %vm321, %v282, 0.0
      %v332 = vsel %vm322, %v283, 0.0
      %v333 = vmax.f32 %v323, %v327
      %v334 = vmax.f32 %v325, %v329
      %vm335 = vcmask 1044480
      %v336 = vsel %vm335, %v331, -inf
      %v337 = vmax.f32 %v333, %v336
      %v338 = vmax.f32 %v337, %v334
      %v339 = vrot.slane %v338, 4
      %v340 = vmax.f32 %v338, %v339
      %v341 = vrot.slane %v340, 2
      %v342 = vmax.f32 %v340, %v341
      %v343 = vrot.slane %v342, 1
      %v344 = vmax.f32 %v342, %v343
      %v345 = vmax.f32 %v324, %v328
      %v346 = vmax.f32 %v326, %v330
      %v347 = vsel %vm335, %v332, -inf
      %v348 = vmax.f32 %v345, %v347
      %v349 = vmax.f32 %v348, %v346
      %v350 = vrot.slane %v349, 4
      %v351 = vmax.f32 %v349, %v350
      %v352 = vrot.slane %v351, 2
      %v353 = vmax.f32 %v351, %v352
      %v354 = vrot.slane %v353, 1
      %v355 = vmax.f32 %v353, %v354
      %v356 = vsub.f32 %v323, %v344
      %v357 = vsub.f32 %v324, %v355
      %v358 = vsub.f32 %v325, %v344
      %v359 = vsub.f32 %v326, %v355
      %v360 = vsub.f32 %v327, %v344
      %v361 = vsub.f32 %v328, %v355
      %v362 = vsub.f32 %v329, %v344
      %v363 = vsub.f32 %v330, %v355
      %v364 = vsub.f32 %v331, %v344
      %v365 = vsub.f32 %v332, %v355
      %v366 = vmul.f32 %v356, 1.442695
      %v367 = vpow.pop %v366
      %v368 = vmul.f32 %v357, 1.442695
      %v369 = vpow.pop %v368
      %v370 = vmul.f32 %v358, 1.442695
      %v371 = vpow.pop %v370
      %v372 = vmul.f32 %v359, 1.442695
      %v373 = vpow.pop %v372
      %v374 = vmul.f32 %v360, 1.442695
      %v375 = vpow.pop %v374
      %v376 = vmul.f32 %v361, 1.442695
      %v377 = vpow.pop %v376
      %v378 = vmul.f32 %v362, 1.442695
      %v379 = vpow.pop %v378
      %v380 = vmul.f32 %v363, 1.442695
      %v381 = vpow.pop %v380
      %v382 = vmul.f32 %v364, 1.442695
      %v383 = vpow.pop %v382
      %v384 = vmul.f32 %v365, 1.442695
      %v385 = vpow.pop %v384
      %v386 = vadd.f32 %v367, %v371
      %v387 = vadd.f32 %v386, %v375
      %v388 = vadd.f32 %v387, %v379
      %v389 = vsel %vm335, %v383, 0.0
      %v390 = vadd.f32 %v388, %v389
      %v391 = vrot.slane %v390, 4
      %v392 = vadd.f32 %v390, %v391
      %v393 = vrot.slane %v392, 2
      %v394 = vadd.f32 %v392, %v393
      %v395 = vrot.slane %v394, 1
      %v396 = vadd.f32 %v394, %v395
      %v397 = vadd.f32 %v369, %v373
      %v398 = vadd.f32 %v397, %v377
      %v399 = vadd.f32 %v398, %v381
      %v400 = vsel %vm335, %v385, 0.0
      %v401 = vadd.f32 %v399, %v400
      %v402 = vrot.slane %v401, 4
      %v403 = vadd.f32 %v401, %v402
      %v404 = vrot.slane %v403, 2
      %v405 = vadd.f32 %v403, %v404
      %v406 = vrot.slane %v405, 1
      %v407 = vadd.f32 %v405, %v406
      %v408 = vlog2.pop %v396
      %v409 = vmul.f32 %v408, 0.6931472
      %v410 = vlog2.pop %v407
      %v411 = vmul.f32 %v410, 0.6931472
      %v412 = vadd.f32 %v344, %v409
      %v413 = vadd.f32 %v355, %v411
      %v414 = vlaneseq
      %v415 = vshrl.u32 %v414, 7
      %v416 = vadd.s32 %v415, 8
      %v417 = vadd.s32 %v415, 16
      %v418 = vadd.s32 %v415, 24
      %v419 = vadd.s32 %v415, 32
      %v420 = vlaneseq
      %v421 = vshrl.u32 %v420, 7
      %v422 = vsub.s32 0, %v421
      %v423 = vrot.slane %v320, %v422
      %v424 = vlaneseq
      %v425 = vshrl.u32 %v424, 7
      %v426 = vsub.s32 1, %v425
      %v427 = vrot.slane %v320, %v426
      %vm428 = vcmp.eq.s32.totalorder %v415, %v423
      %vm429 = vcmp.eq.s32.totalorder %v415, %v427
      %vm430 = vcmp.eq.s32.totalorder %v416, %v423
      %vm431 = vcmp.eq.s32.totalorder %v416, %v427
      %vm432 = vcmp.eq.s32.totalorder %v417, %v423
      %vm433 = vcmp.eq.s32.totalorder %v417, %v427
      %vm434 = vcmp.eq.s32.totalorder %v418, %v423
      %vm435 = vcmp.eq.s32.totalorder %v418, %v427
      %vm436 = vcmp.eq.s32.totalorder %v419, %v423
      %vm437 = vcmp.eq.s32.totalorder %v419, %v427
      %v438 = vsel %vm428, 1, 0
      %v439 = vsel %vm429, 1, 0
      %v440 = vsel %vm430, 1, 0
      %v441 = vsel %vm431, 1, 0
      %v442 = vsel %vm432, 1, 0
      %v443 = vsel %vm433, 1, 0
      %v444 = vsel %vm434, 1, 0
      %v445 = vsel %vm435, 1, 0
      %v446 = vsel %vm436, 1, 0
      %v447 = vsel %vm437, 1, 0
      %v448 = vcvt.s32.f32 %v438
      %v449 = vcvt.s32.f32 %v439
      %v450 = vcvt.s32.f32 %v440
      %v451 = vcvt.s32.f32 %v441
      %v452 = vcvt.s32.f32 %v442
      %v453 = vcvt.s32.f32 %v443
      %v454 = vcvt.s32.f32 %v444
      %v455 = vcvt.s32.f32 %v445
      %v456 = vcvt.s32.f32 %v446
      %v457 = vcvt.s32.f32 %v447
      %v458 = vmul.f32 %v323, %v448
      %v459 = vmul.f32 %v324, %v449
      %v460 = vmul.f32 %v325, %v450
      %v461 = vmul.f32 %v326, %v451
      %v462 = vmul.f32 %v327, %v452
      %v463 = vmul.f32 %v328, %v453
      %v464 = vmul.f32 %v329, %v454
      %v465 = vmul.f32 %v330, %v455
      %v466 = vmul.f32 %v331, %v456
      %v467 = vmul.f32 %v332, %v457
      %v468 = vadd.f32 %v458, %v460
      %v469 = vadd.f32 %v468, %v462
      %v470 = vadd.f32 %v469, %v464
      %v471 = vsel %vm335, %v466, 0.0
      %v472 = vadd.f32 %v470, %v471
      %v473 = vrot.slane %v472, 4
      %v474 = vadd.f32 %v472, %v473
      %v475 = vrot.slane %v474, 2
      %v476 = vadd.f32 %v474, %v475
      %v477 = vrot.slane %v476, 1
      %v478 = vadd.f32 %v476, %v477
      %v479 = vadd.f32 %v459, %v461
      %v480 = vadd.f32 %v479, %v463
      %v481 = vadd.f32 %v480, %v465
      %v482 = vsel %vm335, %v467, 0.0
      %v483 = vadd.f32 %v481, %v482
      %v484 = vrot.slane %v483, 4
      %v485 = vadd.f32 %v483, %v484
      %v486 = vrot.slane %v485, 2
      %v487 = vadd.f32 %v485, %v486
      %v488 = vrot.slane %v487, 1
      %v489 = vadd.f32 %v487, %v488
      %491 = vset.pattern.permute.xlu0 0
      %492 = vperm.xlu0 %491, %v285
      %v493 = vpop.permute.xlu0 %492
      %496 = vset.pattern.permute.xlu0 0
      %497 = vperm.xlu0 %496, %v286
      %v498 = vpop.permute.xlu0 %497
      %501 = vset.pattern.permute.xlu0 0
      %502 = vperm.xlu0 %501, %v287
      %v503 = vpop.permute.xlu0 %502
      %506 = vset.pattern.permute.xlu0 0
      %507 = vperm.xlu0 %506, %v288
      %v508 = vpop.permute.xlu0 %507
      %511 = vset.pattern.permute.xlu0 0
      %512 = vperm.xlu0 %511, %v289
      %v513 = vpop.permute.xlu0 %512
      %v515 = vmul.f32 %v493, %v448
      %v516 = vmul.f32 %v493, %v449
      %v517 = vmul.f32 %v498, %v450
      %v518 = vmul.f32 %v498, %v451
      %v519 = vmul.f32 %v503, %v452
      %v520 = vmul.f32 %v503, %v453
      %v521 = vmul.f32 %v508, %v454
      %v522 = vmul.f32 %v508, %v455
      %v523 = vmul.f32 %v513, %v456
      %v524 = vmul.f32 %v513, %v457
      %v525 = vadd.f32 %v515, %v517
      %v526 = vadd.f32 %v525, %v519
      %v527 = vadd.f32 %v526, %v521
      %v528 = vsel %vm335, %v523, 0.0
      %v529 = vadd.f32 %v527, %v528
      %v530 = vrot.slane %v529, 4
      %v531 = vadd.f32 %v529, %v530
      %v532 = vrot.slane %v531, 2
      %v533 = vadd.f32 %v531, %v532
      %v534 = vrot.slane %v533, 1
      %v535 = vadd.f32 %v533, %v534
      %v536 = vadd.f32 %v516, %v518
      %v537 = vadd.f32 %v536, %v520
      %v538 = vadd.f32 %v537, %v522
      %v539 = vsel %vm335, %v524, 0.0
      %v540 = vadd.f32 %v538, %v539
      %v541 = vrot.slane %v540, 4
      %v542 = vadd.f32 %v540, %v541
      %v543 = vrot.slane %v542, 2
      %v544 = vadd.f32 %v542, %v543
      %v545 = vrot.slane %v544, 1
      %v546 = vadd.f32 %v544, %v545
      %v547 = vsel %vm318, 1, 0
      %v548 = vcvt.s32.f32 %v547
      %v549 = vld [vmem:[#allocation2] sm:$0x3]
      %v550 = vsub.f32 %v412, %v478
      %v551 = vsub.f32 %v413, %v489
      %v552 = vmul.f32 %v535, %v550
      %v553 = vmul.f32 %v546, %v551
      %v555 = vlaneseq
      %v556 = vshrl.u32 %v555, 7
      %v557 = vsub.s32 0, %v556
      %v558 = vrot.slane %v548, %v557
      %v559 = vlaneseq
      %v560 = vshrl.u32 %v559, 7
      %v561 = vsub.s32 1, %v560
      %v562 = vrot.slane %v548, %v561
      %v565 = vmul.f32 %v552, %v558
      %v566 = vmul.f32 %v553, %v562
      %v569 = vcombine.low %v565, %v566
      %v571 = vunpack.c.l.s4 1966171168
      %v572 = vunpack.c.0.s8 %v571
      %v573 = vlaneseq
      %v574 = vshrl.u32 %v573, 7
      %v575 = vsub.s32 %v572, %v574
      %v576 = vrot.slane %v569, %v575
      %v578 = vunpack.c.l.s4 1966171168
      %v579 = vunpack.c.0.s8 %v578
      %v580 = vlaneseq
      %v581 = vshrl.u32 %v580, 7
      %v582 = vsub.s32 %v579, %v581
      %v583 = vrot.slane %v576, %v582
      %v585 = vadd.f32 %v549, %v583
      %v586 = vlaneseq
      %vm587 = vcmp.ge.s32.totalorder %v586, 0
      %vm588 = vcmp.lt.s32.totalorder %v586, 256
      %vm589 = vmand %vm587, %vm588
      %590 = vst.msk [vmem:[#allocation2] sm:$0x3] %vm589, %v585
      %v591 = vld [vmem:[#allocation3] sm:$0x3]
      %v592 = vadd.f32 %v591, %v548
      %593 = vst.msk [vmem:[#allocation3] sm:$0x3] %vm589, %v592
      // Predicated region
      $region37: #{cross_entropy_loss_2d.2} parent=31 // pred_check
        %p594 = pneg %p264
      $region38: #{cross_entropy_loss_2d.2} parent=31 // pred_check_branch
        %596 = sbr.rel (%p594) target = $region40
      $region39: #{cross_entropy_loss_2d.2} parent=31 // pred_region
        %v597 = vld [vmem:[#allocation2] sm:$0x3]
        %v599 = vlaneseq
        %v600 = vshrl.u32 %v599, 7
        %v601 = vsub.s32 0, %v600
        %v602 = vrot.slane %v597, %v601
        %v603 = vlaneseq
        %v604 = vshrl.u32 %v603, 7
        %v605 = vsub.s32 1, %v604
        %v606 = vrot.slane %v597, %v605
        %vm609 = vcmask 1040384
        %v610 = vsel %vm609, %v602, 0.0
        %v611 = vsel %vm609, %v606, 0.0
        %v612 = vadd.f32 %v610, %v611
        %613 = vadd.xlane.f32.xlu0 %v612
        %v614 = vpop.xlane.xlu0 %613
        %v615 = vrot.slane %v614, 4
        %v616 = vadd.f32 %v614, %v615
        %v617 = vrot.slane %v616, 2
        %v618 = vadd.f32 %v616, %v617
        %v619 = vrot.slane %v618, 1
        %v620 = vadd.f32 %v618, %v619
        %s621 = vtos %v620
        %v622 = vstv %s621
        %vm623 = vcmask 0
        %624 = vst.msk [vmem:[%s260] sm:$0x1] %vm623, %v622
        %v625 = vld [vmem:[#allocation3] sm:$0x3]
        %v627 = vlaneseq
        %v628 = vshrl.u32 %v627, 7
        %v629 = vsub.s32 0, %v628
        %v630 = vrot.slane %v625, %v629
        %v631 = vlaneseq
        %v632 = vshrl.u32 %v631, 7
        %v633 = vsub.s32 1, %v632
        %v634 = vrot.slane %v625, %v633
        %v637 = vsel %vm609, %v630, 0.0
        %v638 = vsel %vm609, %v634, 0.0
        %v639 = vadd.f32 %v637, %v638
        %640 = vadd.xlane.f32.xlu0 %v639
        %v641 = vpop.xlane.xlu0 %640
        %v642 = vrot.slane %v641, 4
        %v643 = vadd.f32 %v641, %v642
        %v644 = vrot.slane %v643, 2
        %v645 = vadd.f32 %v643, %v644
        %v646 = vrot.slane %v645, 1
        %v647 = vadd.f32 %v645, %v646
        %s648 = vtos %v647
        %v649 = vstv %s648
        %650 = vst.msk [vmem:[%s263] sm:$0x1] %vm623, %v649
      $region40: #{cross_entropy_loss_2d.2} parent=31 // pred_fallthru
        _
      %p651 = scmp.lt.s32.totalorder %s20, 1
      %s652 = scalar_select %p651, %s20, 1
      %s653 = scalar_lea.vmem %s3, %s652
      %p654 = scmp.lt.s32.totalorder %s20, 1
      %s655 = scalar_select %p654, %s20, 1
      %s656 = scalar_lea.vmem %s4, %s655
      // Predicated region
      $region41: #{cross_entropy_loss_2d.2} parent=31 // pred_check
        %p657 = pneg %p123
      $region42: #{cross_entropy_loss_2d.2} parent=31 // pred_check_branch
        %659 = sbr.rel (%p657) target = $region44
      $region43: #{cross_entropy_loss_2d.2} parent=31 // pred_region
        _
      $region44: #{cross_entropy_loss_2d.2} parent=31 // pred_fallthru
        _
      // Predicated region
      $region45: #{cross_entropy_loss_2d.2} parent=31 // pred_check
        %p660 = pneg %p149
      $region46: #{cross_entropy_loss_2d.2} parent=31 // pred_check_branch
        %662 = sbr.rel (%p660) target = $region48
      $region47: #{cross_entropy_loss_2d.2} parent=31 // pred_region
        _
      $region48: #{cross_entropy_loss_2d.2} parent=31 // pred_fallthru
        _
    $region32: #{cross_entropy_loss_2d.2} parent=5 // pred_fallthru
      _
    %p663 = scmp.le.s32.totalorder 2, %s11
    // Predicated region
    $region49: #{cross_entropy_loss_2d.2} parent=5 // pred_check
      %p664 = pneg %p663
    $region50: #{cross_entropy_loss_2d.2} parent=5 // pred_check_branch
      %666 = sbr.rel (%p664) target = $region52
    $region51: #{cross_entropy_loss_2d.2} parent=5 // pred_region
      %s667 = ssub.s32 %s11, 2
      // Predicated region
      $region53: #{cross_entropy_loss_2d.2} parent=51 // pred_check
        %p668 = pneg %p129
      $region54: #{cross_entropy_loss_2d.2} parent=51 // pred_check_branch
        %670 = sbr.rel (%p668) target = $region56
      $region55: #{cross_entropy_loss_2d.2} parent=51 // pred_region
        %p671 = scmp.lt.s32.totalorder %s22, 1
        %s672 = scalar_select %p671, %s22, 1
        %s673 = scalar_lea.vmem %s3, %s672
      $region56: #{cross_entropy_loss_2d.2} parent=51 // pred_fallthru
        _
      // Predicated region
      $region57: #{cross_entropy_loss_2d.2} parent=51 // pred_check
        %p674 = pneg %p155
      $region58: #{cross_entropy_loss_2d.2} parent=51 // pred_check_branch
        %676 = sbr.rel (%p674) target = $region60
      $region59: #{cross_entropy_loss_2d.2} parent=51 // pred_region
        %p677 = scmp.lt.s32.totalorder %s22, 1
        %s678 = scalar_select %p677, %s22, 1
        %s679 = scalar_lea.vmem %s4, %s678
      $region60: #{cross_entropy_loss_2d.2} parent=51 // pred_fallthru
        _
    $region52: #{cross_entropy_loss_2d.2} parent=5 // pred_fallthru
      _
  $region6: #{cross_entropy_loss_2d.2} parent=0 // loop_footer
    %s15 = sadd.s32 1, %s11
  $region7: #{cross_entropy_loss_2d.2} parent=0 // loop_footer_branch
    %10 = sbr.rel target = $region3
  $region8: #{cross_entropy_loss_2d.2} parent=0 // loop_exit
    _

// kernel: cross_entropy_loss_2d.3
$region0: #{cross_entropy_loss_2d.3}
  #allocation0 [shape = 'u32[]', space=smem, size = 0x4, offset = 0x4, fixed_abs, tag = 'smem constant byte address 0x4 - core index']
  #allocation1 [shape = 'u32[144,128]{1,0:T(1,128)}', space=vmem, size = 0x12000, scoped, tag = 'internal scratch']
  #allocation2 [shape = 'f32[1,64]{1,0:T(1,128)}', space=vmem, size = 0x200, scoped, tag = 'scratch operand']
  #allocation3 [shape = 'f32[1,64]{1,0:T(1,128)}', space=vmem, size = 0x200, scoped, tag = 'scratch operand']
  %s0 = inlined_call_operand.vmem [shape: f32[2,37,64], index: 0, kind: input, shape index: {}]
  %s1 = inlined_call_operand.vmem [shape: s32[2,1,64], index: 1, kind: input, shape index: {}]
  %s2 = inlined_call_operand.vmem [shape: f32[37,1], index: 2, kind: input, shape index: {}]
  %s3 = inlined_call_operand.vmem [shape: f32[2,1,1], index: 3, kind: output, shape index: {0}]
  %s4 = inlined_call_operand.vmem [shape: f32[2,1,1], index: 4, kind: output, shape index: {1}]
  %5 = xla_tuple %s3, %s4
  %s6 = sld [smem:[#allocation0]]
  $region61: #{cross_entropy_loss_2d.3} parent=0
    _
  %s8 = ssub.s32 1, %s6
  %s9 = scalar_select 0, %s8, %s6
  loop: start=0, step=1, limit=4
  $region2: #{cross_entropy_loss_2d.3} parent=0 // loop_pre_header
    _
  $region3: #{cross_entropy_loss_2d.3} parent=0 // loop_header
    %s11 = sphi 0, %s15
    %p12 = scmp.ge.s32.totalorder %s11, 4
    %s18 = sphi 0, %s30
    %s19 = sphi 0, %s26
    %s20 = sphi 0, %s18
    %s21 = sphi 0, %s19
    %s22 = sphi 0, %s20
    %s23 = sphi 0, %s21
    %s35 = sphi 0, %s37
    %s38 = sphi 0, %s35
    %s39 = sphi 0, %s38
    %s55 = sphi 0, %s39
    %s63 = sphi 0, %s65
    %s66 = sphi 0, %s63
    %s67 = sphi 0, %s66
    %s83 = sphi 0, %s67
    %s87 = sphi 0, %s87
    %s89 = sphi 0, %s87
    %s90 = sphi 0, %s89
    %s104 = sphi 0, %s90
    %s110 = sphi 0, %s112
    %s113 = sphi 0, %s110
    %s114 = sphi 0, %s113
    %s130 = sphi 0, %s114
    %s136 = sphi 0, %s138
    %s139 = sphi 0, %s136
    %s140 = sphi 0, %s139
    %s156 = sphi 0, %s140
  $region4: #{cross_entropy_loss_2d.3} parent=0 // loop_header_branch
    %14 = sbr.rel (%p12) target = $region8
  $region5: #{cross_entropy_loss_2d.3} parent=0 // loop_body
    %s16 = ssub.s32 %s11, 1
    %s17 = ssub.s32 %s11, 2
    %s24 = sadd.s32 1, %s19
    %p25 = scmp.ge.s32.totalorder %s24, 1
    %s26 = scalar_select %p25, 0, %s24
    %s27 = sadd.s32 1, %s18
    %s28 = scalar_select %p25, %s27, %s18
    %p29 = scmp.ge.s32.totalorder %s28, 2
    %s30 = scalar_select %p29, 0, %s28
    %s31 = ssub.s32 %s18, %s30
    %s32 = ssub.s32 %s19, %s26
    %s33 = sor.u32 %s31, %s32
    %p34 = scmp.eq.s32.totalorder %s33, 0
    %s36 = sadd.s32 %s35, 1
    %s37 = scalar_select %p34, %s35, %s36
    %p40 = pneg %p34
    %p41 = scmp.eq.s32.totalorder %s11, 1
    %p42 = por %p40, %p41
    %p43 = scmp.ne.s32.totalorder %s35, %s38
    %p44 = scmp.eq.s32.totalorder %s11, 0
    %p45 = por %p43, %p44
    %p46 = scmp.ne.s32.totalorder %s35, %s38
    %p47 = scmp.eq.s32.totalorder %s16, 1
    %p48 = por %p46, %p47
    %p49 = scmp.ne.s32.totalorder %s38, %s39
    %p50 = scmp.eq.s32.totalorder %s16, 0
    %p51 = por %p49, %p50
    %p52 = scmp.ne.s32.totalorder %s38, %s39
    %p53 = scmp.eq.s32.totalorder %s17, 1
    %p54 = por %p52, %p53
    %p56 = scmp.ne.s32.totalorder %s39, %s55
    %p57 = scmp.eq.s32.totalorder %s17, 0
    %p58 = por %p56, %p57
    %s59 = ssub.s32 %s18, %s30
    %s60 = ssub.s32 %s19, %s26
    %s61 = sor.u32 %s59, %s60
    %p62 = scmp.eq.s32.totalorder %s61, 0
    %s64 = sadd.s32 %s63, 1
    %s65 = scalar_select %p62, %s63, %s64
    %p68 = pneg %p62
    %p69 = scmp.eq.s32.totalorder %s11, 1
    %p70 = por %p68, %p69
    %p71 = scmp.ne.s32.totalorder %s63, %s66
    %p72 = scmp.eq.s32.totalorder %s11, 0
    %p73 = por %p71, %p72
    %p74 = scmp.ne.s32.totalorder %s63, %s66
    %p75 = scmp.eq.s32.totalorder %s16, 1
    %p76 = por %p74, %p75
    %p77 = scmp.ne.s32.totalorder %s66, %s67
    %p78 = scmp.eq.s32.totalorder %s16, 0
    %p79 = por %p77, %p78
    %p80 = scmp.ne.s32.totalorder %s66, %s67
    %p81 = scmp.eq.s32.totalorder %s17, 1
    %p82 = por %p80, %p81
    %p84 = scmp.ne.s32.totalorder %s67, %s83
    %p85 = scmp.eq.s32.totalorder %s17, 0
    %p86 = por %p84, %p85
    %s88 = sadd.s32 %s87, 1
    %p91 = scmp.eq.s32.totalorder %s11, 1
    %p92 = scmp.ne.s32.totalorder %s87, %s89
    %p93 = scmp.eq.s32.totalorder %s11, 0
    %p94 = por %p92, %p93
    %p95 = scmp.ne.s32.totalorder %s87, %s89
    %p96 = scmp.eq.s32.totalorder %s16, 1
    %p97 = por %p95, %p96
    %p98 = scmp.ne.s32.totalorder %s89, %s90
    %p99 = scmp.eq.s32.totalorder %s16, 0
    %p100 = por %p98, %p99
    %p101 = scmp.ne.s32.totalorder %s89, %s90
    %p102 = scmp.eq.s32.totalorder %s17, 1
    %p103 = por %p101, %p102
    %p105 = scmp.ne.s32.totalorder %s90, %s104
    %p106 = scmp.eq.s32.totalorder %s17, 0
    %p107 = por %p105, %p106
    %s108 = ssub.s32 %s18, %s30
    %p109 = scmp.eq.s32.totalorder %s108, 0
    %s111 = sadd.s32 %s110, 1
    %s112 = scalar_select %p109, %s110, %s111
    %p115 = pneg %p109
    %p116 = scmp.eq.s32.totalorder %s11, 1
    %p117 = por %p115, %p116
    %p118 = scmp.ne.s32.totalorder %s110, %s113
    %p119 = scmp.eq.s32.totalorder %s11, 0
    %p120 = por %p118, %p119
    %p121 = scmp.ne.s32.totalorder %s110, %s113
    %p122 = scmp.eq.s32.totalorder %s16, 1
    %p123 = por %p121, %p122
    %p124 = scmp.ne.s32.totalorder %s113, %s114
    %p125 = scmp.eq.s32.totalorder %s16, 0
    %p126 = por %p124, %p125
    %p127 = scmp.ne.s32.totalorder %s113, %s114
    %p128 = scmp.eq.s32.totalorder %s17, 1
    %p129 = por %p127, %p128
    %p131 = scmp.ne.s32.totalorder %s114, %s130
    %p132 = scmp.eq.s32.totalorder %s17, 0
    %p133 = por %p131, %p132
    %s134 = ssub.s32 %s18, %s30
    %p135 = scmp.eq.s32.totalorder %s134, 0
    %s137 = sadd.s32 %s136, 1
    %s138 = scalar_select %p135, %s136, %s137
    %p141 = pneg %p135
    %p142 = scmp.eq.s32.totalorder %s11, 1
    %p143 = por %p141, %p142
    %p144 = scmp.ne.s32.totalorder %s136, %s139
    %p145 = scmp.eq.s32.totalorder %s11, 0
    %p146 = por %p144, %p145
    %p147 = scmp.ne.s32.totalorder %s136, %s139
    %p148 = scmp.eq.s32.totalorder %s16, 1
    %p149 = por %p147, %p148
    %p150 = scmp.ne.s32.totalorder %s139, %s140
    %p151 = scmp.eq.s32.totalorder %s16, 0
    %p152 = por %p150, %p151
    %p153 = scmp.ne.s32.totalorder %s139, %s140
    %p154 = scmp.eq.s32.totalorder %s17, 1
    %p155 = por %p153, %p154
    %p157 = scmp.ne.s32.totalorder %s140, %s156
    %p158 = scmp.eq.s32.totalorder %s17, 0
    %p159 = por %p157, %p158
    %p160 = scmp.le.s32.totalorder 1, %s11
    %p161 = scmp.lt.s32.totalorder %s11, 3
    %p162 = pnand %p160, %p161
    %p163 = pneg %p162
    // Predicated region
    $region9: #{cross_entropy_loss_2d.3} parent=5 // pred_check
      _
    $region10: #{cross_entropy_loss_2d.3} parent=5 // pred_check_branch
      %165 = sbr.rel (%p162) target = $region12
    $region11: #{cross_entropy_loss_2d.3} parent=5 // pred_region
      %s166 = ssub.s32 %s11, 1
      // Predicated region
      $region13: #{cross_entropy_loss_2d.3} parent=11 // pred_check
        %p167 = pneg %p100
      $region14: #{cross_entropy_loss_2d.3} parent=11 // pred_check_branch
        %169 = sbr.rel (%p167) target = $region16
      $region15: #{cross_entropy_loss_2d.3} parent=11 // pred_region
        _
      $region16: #{cross_entropy_loss_2d.3} parent=11 // pred_fallthru
        _
    $region12: #{cross_entropy_loss_2d.3} parent=5 // pred_fallthru
      _
    %p170 = scmp.lt.s32.totalorder %s11, 2
    // Predicated region
    $region17: #{cross_entropy_loss_2d.3} parent=5 // pred_check
      %p171 = pneg %p170
    $region18: #{cross_entropy_loss_2d.3} parent=5 // pred_check_branch
      %173 = sbr.rel (%p171) target = $region20
    $region19: #{cross_entropy_loss_2d.3} parent=5 // pred_region
      // Predicated region
      $region21: #{cross_entropy_loss_2d.3} parent=19 // pred_check
        %p174 = pneg %p45
      $region22: #{cross_entropy_loss_2d.3} parent=19 // pred_check_branch
        %176 = sbr.rel (%p174) target = $region24
      $region23: #{cross_entropy_loss_2d.3} parent=19 // pred_region
        %p177 = scmp.lt.s32.totalorder %s18, 1
        %s178 = scalar_select %p177, %s18, 1
        %p179 = scmp.lt.s32.totalorder %s19, 0
        %s180 = scalar_select %p179, %s19, 0
        %s181 = smul.addr %s178, 5
        %s182 = sadd.s32 %s180, %s181
        %s183 = smul.addr %s182, 8
        %s184 = scalar_lea.vmem %s0, %s183
      $region24: #{cross_entropy_loss_2d.3} parent=19 // pred_fallthru
        _
      // Predicated region
      $region25: #{cross_entropy_loss_2d.3} parent=19 // pred_check
        %p185 = pneg %p73
      $region26: #{cross_entropy_loss_2d.3} parent=19 // pred_check_branch
        %187 = sbr.rel (%p185) target = $region28
      $region27: #{cross_entropy_loss_2d.3} parent=19 // pred_region
        %p188 = scmp.lt.s32.totalorder %s18, 1
        %s189 = scalar_select %p188, %s18, 1
        %p190 = scmp.lt.s32.totalorder %s19, 0
        %s191 = scalar_select %p190, %s19, 0
        %s192 = sadd.s32 %s191, %s189
        %s193 = scalar_lea.vmem %s1, %s192
      $region28: #{cross_entropy_loss_2d.3} parent=19 // pred_fallthru
        _
    $region20: #{cross_entropy_loss_2d.3} parent=5 // pred_fallthru
      _
    %p194 = scmp.le.s32.totalorder 1, %s11
    %p195 = scmp.lt.s32.totalorder %s11, 3
    %p196 = pnand %p194, %p195
    %p197 = pneg %p196
    // Predicated region
    $region29: #{cross_entropy_loss_2d.3} parent=5 // pred_check
      _
    $region30: #{cross_entropy_loss_2d.3} parent=5 // pred_check_branch
      %199 = sbr.rel (%p196) target = $region32
    $region31: #{cross_entropy_loss_2d.3} parent=5 // pred_region
      %s200 = ssub.s32 %s11, 1
      %p201 = scmp.lt.s32.totalorder %s20, 1
      %s202 = scalar_select %p201, %s20, 1
      %p203 = scmp.lt.s32.totalorder %s21, 0
      %s204 = scalar_select %p203, %s21, 0
      %s205 = smul.addr %s202, 5
      %s206 = sadd.s32 %s204, %s205
      %s207 = smul.addr %s206, 8
      %s208 = scalar_lea.vmem %s0, %s207
      %p209 = pneg %p51
      %p210 = pneg %p48
      %p211 = scmp.lt.s32.totalorder %s20, 1
      %s212 = scalar_select %p211, %s20, 1
      %p213 = scmp.lt.s32.totalorder %s21, 0
      %s214 = scalar_select %p213, %s21, 0
      %s215 = sadd.s32 %s214, %s212
      %s216 = scalar_lea.vmem %s1, %s215
      %p217 = pneg %p79
      %p218 = pneg %p76
      %p219 = pneg %p100
      %p220 = pneg %p97
      %p221 = pneg %p126
      %p222 = pneg %p123
      %p223 = scmp.lt.s32.totalorder %s20, 1
      %s224 = scalar_select %p223, %s20, 1
      %s225 = scalar_lea.vmem %s3, %s224
      %p226 = pneg %p152
      %p227 = pneg %p149
      %p228 = scmp.lt.s32.totalorder %s20, 1
      %s229 = scalar_select %p228, %s20, 1
      %s230 = scalar_lea.vmem %s4, %s229
      %p231 = scmp.lt.s32.totalorder %s20, 1
      %s232 = scalar_select %p231, %s20, 1
      %p233 = scmp.lt.s32.totalorder %s21, 0
      %s234 = scalar_select %p233, %s21, 0
      %s235 = smul.addr %s232, 5
      %s236 = sadd.s32 %s234, %s235
      %s237 = smul.addr %s236, 8
      %s238 = scalar_lea.vmem %s0, %s237
      %p239 = scmp.lt.s32.totalorder %s20, 1
      %s240 = scalar_select %p239, %s20, 1
      %p241 = scmp.lt.s32.totalorder %s21, 0
      %s242 = scalar_select %p241, %s21, 0
      %s243 = sadd.s32 %s242, %s240
      %s244 = scalar_lea.vmem %s1, %s243
      %p245 = scmp.lt.s32.totalorder %s20, 1
      %s246 = scalar_select %p245, %s20, 1
      %s247 = scalar_lea.vmem %s3, %s246
      %p248 = scmp.lt.s32.totalorder %s20, 1
      %s249 = scalar_select %p248, %s20, 1
      %s250 = scalar_lea.vmem %s4, %s249
      %p251 = scmp.eq.s32.totalorder %s21, 0
      // Predicated region
      $region33: #{cross_entropy_loss_2d.3} parent=31 // pred_check
        %p252 = pneg %p251
      $region34: #{cross_entropy_loss_2d.3} parent=31 // pred_check_branch
        %254 = sbr.rel (%p252) target = $region36
      $region35: #{cross_entropy_loss_2d.3} parent=31 // pred_region
        %vm255 = vcmask 516096
        %256 = vst.msk [vmem:[#allocation2] sm:$0x1] %vm255, 0.0
        %257 = vst.msk [vmem:[#allocation3] sm:$0x1] %vm255, 0.0
      $region36: #{cross_entropy_loss_2d.3} parent=31 // pred_fallthru
        _
      %v258 = vld [vmem:[%s238] sm:$0xff]
      %v259 = vld [vmem:[%s238 + $0x8] sm:$0xff]
      %v260 = vld [vmem:[%s238 + $0x10] sm:$0xff]
      %v261 = vld [vmem:[%s238 + $0x18] sm:$0xff]
      %v262 = vld [vmem:[%s238 + $0x20] sm:$0x1f]
      %v263 = vld [vmem:[%s244] sm:$0x1]
      %v264 = vld [vmem:[%s2] sm:$0xff]
      %v265 = vld [vmem:[%s2 + $0x8] sm:$0xff]
      %v266 = vld [vmem:[%s2 + $0x10] sm:$0xff]
      %v267 = vld [vmem:[%s2 + $0x18] sm:$0xff]
      %v268 = vld [vmem:[%s2 + $0x20] sm:$0x1f]
      %v269 = vlaneseq
      %v270 = vand.u32 %v269, 127
      %s271 = smul.u32 %s21, 64
      %v272 = vstv %s271
      %v273 = vadd.s32 %v272, %v270
      %vm274 = vcmp.lt.s32.totalorder %v273, 64
      %vm275 = vcmp.gt.s32.totalorder %v263, 0
      %vm276 = vmand %vm275, %vm274
      %v277 = vsub.s32 %v263, 1
      %v278 = vsel %vm276, %v277, 0
      %v279 = vsel %vm274, 1, 0
      %vm280 = vcmp.eq.s32.totalorder %v279, 1
      %v281 = vsel %vm280, %v258, 0.0
      %v282 = vsel %vm280, %v259, 0.0
      %v283 = vsel %vm280, %v260, 0.0
      %v284 = vsel %vm280, %v261, 0.0
      %v285 = vsel %vm280, %v262, 0.0
      %vm286 = vcmask 523264
      %v287 = vsel %vm286, %v281, -inf
      %v288 = vsel %vm286, %v282, -inf
      %v289 = vsel %vm286, %v283, -inf
      %v290 = vsel %vm286, %v284, -inf
      %vm291 = vcmask 520192
      %v292 = vsel %vm291, %v285, -inf
      %v293 = vmax.f32 %v287, %v292
      %v294 = vmax.f32 %v293, %v288
      %v295 = vmax.f32 %v289, %v290
      %v296 = vmax.f32 %v294, %v295
      %v297 = vrot.slane %v296, 4
      %v298 = vmax.f32 %v296, %v297
      %v299 = vrot.slane %v298, 2
      %v300 = vmax.f32 %v298, %v299
      %v301 = vrot.slane %v300, 1
      %v302 = vmax.f32 %v300, %v301
      %v303 = vsub.f32 %v281, %v302
      %v304 = vsub.f32 %v282, %v302
      %v305 = vsub.f32 %v283, %v302
      %v306 = vsub.f32 %v284, %v302
      %v307 = vsub.f32 %v285, %v302
      %v308 = vmul.f32 %v303, 1.442695
      %v309 = vpow.pop %v308
      %v310 = vmul.f32 %v304, 1.442695
      %v311 = vpow.pop %v310
      %v312 = vmul.f32 %v305, 1.442695
      %v313 = vpow.pop %v312
      %v314 = vmul.f32 %v306, 1.442695
      %v315 = vpow.pop %v314
      %v316 = vmul.f32 %v307, 1.442695
      %v317 = vpow.pop %v316
      %v318 = vsel %vm286, %v309, 0.0
      %v319 = vsel %vm286, %v311, 0.0
      %v320 = vadd.f32 %v318, %v319
      %v321 = vsel %vm286, %v313, 0.0
      %v322 = vadd.f32 %v320, %v321
      %v323 = vsel %vm286, %v315, 0.0
      %v324 = vadd.f32 %v322, %v323
      %v325 = vsel %vm291, %v317, 0.0
      %v326 = vadd.f32 %v324, %v325
      %v327 = vrot.slane %v326, 4
      %v328 = vadd.f32 %v326, %v327
      %v329 = vrot.slane %v328, 2
      %v330 = vadd.f32 %v328, %v329
      %v331 = vrot.slane %v330, 1
      %v332 = vadd.f32 %v330, %v331
      %v333 = vlog2.pop %v332
      %v334 = vmul.f32 %v333, 0.6931472
      %v335 = vadd.f32 %v302, %v334
      %v336 = vlaneseq
      %v337 = vshrl.u32 %v336, 7
      %v338 = vadd.s32 %v337, 8
      %v339 = vadd.s32 %v337, 16
      %v340 = vadd.s32 %v337, 24
      %v341 = vadd.s32 %v337, 32
      %v342 = vlaneseq
      %v343 = vshrl.u32 %v342, 7
      %v344 = vsub.s32 0, %v343
      %v345 = vrot.slane %v278, %v344
      %vm346 = vcmp.eq.s32.totalorder %v337, %v345
      %vm347 = vcmp.eq.s32.totalorder %v338, %v345
      %vm348 = vcmp.eq.s32.totalorder %v339, %v345
      %vm349 = vcmp.eq.s32.totalorder %v340, %v345
      %vm350 = vcmp.eq.s32.totalorder %v341, %v345
      %v351 = vsel %vm346, 1, 0
      %v352 = vsel %vm347, 1, 0
      %v353 = vsel %vm348, 1, 0
      %v354 = vsel %vm349, 1, 0
      %v355 = vsel %vm350, 1, 0
      %v356 = vcvt.s32.f32 %v351
      %v357 = vcvt.s32.f32 %v352
      %v358 = vcvt.s32.f32 %v353
      %v359 = vcvt.s32.f32 %v354
      %v360 = vcvt.s32.f32 %v355
      %v361 = vmul.f32 %v281, %v356
      %v362 = vmul.f32 %v282, %v357
      %v363 = vmul.f32 %v283, %v358
      %v364 = vmul.f32 %v284, %v359
      %v365 = vmul.f32 %v285, %v360
      %v366 = vsel %vm286, %v361, 0.0
      %v367 = vsel %vm286, %v362, 0.0
      %v368 = vadd.f32 %v366, %v367
      %v369 = vsel %vm286, %v363, 0.0
      %v370 = vadd.f32 %v368, %v369
      %v371 = vsel %vm286, %v364, 0.0
      %v372 = vadd.f32 %v370, %v371
      %v373 = vsel %vm291, %v365, 0.0
      %v374 = vadd.f32 %v372, %v373
      %v375 = vrot.slane %v374, 4
      %v376 = vadd.f32 %v374, %v375
      %v377 = vrot.slane %v376, 2
      %v378 = vadd.f32 %v376, %v377
      %v379 = vrot.slane %v378, 1
      %v380 = vadd.f32 %v378, %v379
      %382 = vset.pattern.permute.xlu0 0
      %383 = vperm.xlu0 %382, %v264
      %v384 = vpop.permute.xlu0 %383
      %387 = vset.pattern.permute.xlu0 0
      %388 = vperm.xlu0 %387, %v265
      %v389 = vpop.permute.xlu0 %388
      %392 = vset.pattern.permute.xlu0 0
      %393 = vperm.xlu0 %392, %v266
      %v394 = vpop.permute.xlu0 %393
      %397 = vset.pattern.permute.xlu0 0
      %398 = vperm.xlu0 %397, %v267
      %v399 = vpop.permute.xlu0 %398
      %402 = vset.pattern.permute.xlu0 0
      %403 = vperm.xlu0 %402, %v268
      %v404 = vpop.permute.xlu0 %403
      %v406 = vmul.f32 %v384, %v356
      %v407 = vmul.f32 %v389, %v357
      %v408 = vmul.f32 %v394, %v358
      %v409 = vmul.f32 %v399, %v359
      %v410 = vmul.f32 %v404, %v360
      %v411 = vsel %vm286, %v406, 0.0
      %v412 = vsel %vm286, %v407, 0.0
      %v413 = vadd.f32 %v411, %v412
      %v414 = vsel %vm286, %v408, 0.0
      %v415 = vadd.f32 %v413, %v414
      %v416 = vsel %vm286, %v409, 0.0
      %v417 = vadd.f32 %v415, %v416
      %v418 = vsel %vm291, %v410, 0.0
      %v419 = vadd.f32 %v417, %v418
      %v420 = vrot.slane %v419, 4
      %v421 = vadd.f32 %v419, %v420
      %v422 = vrot.slane %v421, 2
      %v423 = vadd.f32 %v421, %v422
      %v424 = vrot.slane %v423, 1
      %v425 = vadd.f32 %v423, %v424
      %v426 = vsel %vm276, 1, 0
      %v427 = vcvt.s32.f32 %v426
      %v428 = vld [vmem:[#allocation2] sm:$0x1]
      %v429 = vsub.f32 %v335, %v380
      %v430 = vmul.f32 %v425, %v429
      %v431 = vmul.f32 %v430, %v427
      %v432 = vadd.f32 %v428, %v431
      %vm433 = vcmask 516096
      %434 = vst.msk [vmem:[#allocation2] sm:$0x1] %vm433, %v432
      %v435 = vld [vmem:[#allocation3] sm:$0x1]
      %v436 = vadd.f32 %v435, %v427
      %437 = vst.msk [vmem:[#allocation3] sm:$0x1] %vm433, %v436
      // Predicated region
      $region37: #{cross_entropy_loss_2d.3} parent=31 // pred_check
        %p438 = pneg %p251
      $region38: #{cross_entropy_loss_2d.3} parent=31 // pred_check_branch
        %440 = sbr.rel (%p438) target = $region40
      $region39: #{cross_entropy_loss_2d.3} parent=31 // pred_region
        %v441 = vld [vmem:[#allocation2] sm:$0x1]
        %v442 = vsel %vm433, %v441, 0.0
        %443 = vadd.xlane.f32.xlu0 %v442
        %v444 = vpop.xlane.xlu0 %443
        %v445 = vrot.slane %v444, 4
        %v446 = vadd.f32 %v444, %v445
        %v447 = vrot.slane %v446, 2
        %v448 = vadd.f32 %v446, %v447
        %v449 = vrot.slane %v448, 1
        %v450 = vadd.f32 %v448, %v449
        %s451 = vtos %v450
        %v452 = vstv %s451
        %vm453 = vcmask 0
        %454 = vst.msk [vmem:[%s247] sm:$0x1] %vm453, %v452
        %v455 = vld [vmem:[#allocation3] sm:$0x1]
        %v456 = vsel %vm433, %v455, 0.0
        %457 = vadd.xlane.f32.xlu0 %v456
        %v458 = vpop.xlane.xlu0 %457
        %v459 = vrot.slane %v458, 4
        %v460 = vadd.f32 %v458, %v459
        %v461 = vrot.slane %v460, 2
        %v462 = vadd.f32 %v460, %v461
        %v463 = vrot.slane %v462, 1
        %v464 = vadd.f32 %v462, %v463
        %s465 = vtos %v464
        %v466 = vstv %s465
        %467 = vst.msk [vmem:[%s250] sm:$0x1] %vm453, %v466
      $region40: #{cross_entropy_loss_2d.3} parent=31 // pred_fallthru
        _
      %p468 = scmp.lt.s32.totalorder %s20, 1
      %s469 = scalar_select %p468, %s20, 1
      %s470 = scalar_lea.vmem %s3, %s469
      %p471 = scmp.lt.s32.totalorder %s20, 1
      %s472 = scalar_select %p471, %s20, 1
      %s473 = scalar_lea.vmem %s4, %s472
      // Predicated region
      $region41: #{cross_entropy_loss_2d.3} parent=31 // pred_check
        %p474 = pneg %p123
      $region42: #{cross_entropy_loss_2d.3} parent=31 // pred_check_branch
        %476 = sbr.rel (%p474) target = $region44
      $region43: #{cross_entropy_loss_2d.3} parent=31 // pred_region
        _
      $region44: #{cross_entropy_loss_2d.3} parent=31 // pred_fallthru
        _
      // Predicated region
      $region45: #{cross_entropy_loss_2d.3} parent=31 // pred_check
        %p477 = pneg %p149
      $region46: #{cross_entropy_loss_2d.3} parent=31 // pred_check_branch
        %479 = sbr.rel (%p477) target = $region48
      $region47: #{cross_entropy_loss_2d.3} parent=31 // pred_region
        _
      $region48: #{cross_entropy_loss_2d.3} parent=31 // pred_fallthru
        _
    $region32: #{cross_entropy_loss_2d.3} parent=5 // pred_fallthru
      _
    %p480 = scmp.le.s32.totalorder 2, %s11
    // Predicated region
    $region49: #{cross_entropy_loss_2d.3} parent=5 // pred_check
      %p481 = pneg %p480
    $region50: #{cross_entropy_loss_2d.3} parent=5 // pred_check_branch
      %483 = sbr.rel (%p481) target = $region52
    $region51: #{cross_entropy_loss_2d.3} parent=5 // pred_region
      %s484 = ssub.s32 %s11, 2
      // Predicated region
      $region53: #{cross_entropy_loss_2d.3} parent=51 // pred_check
        %p485 = pneg %p129
      $region54: #{cross_entropy_loss_2d.3} parent=51 // pred_check_branch
        %487 = sbr.rel (%p485) target = $region56
      $region55: #{cross_entropy_loss_2d.3} parent=51 // pred_region
        %p488 = scmp.lt.s32.totalorder %s22, 1
        %s489 = scalar_select %p488, %s22, 1
        %s490 = scalar_lea.vmem %s3, %s489
      $region56: #{cross_entropy_loss_2d.3} parent=51 // pred_fallthru
        _
      // Predicated region
      $region57: #{cross_entropy_loss_2d.3} parent=51 // pred_check
        %p491 = pneg %p155
      $region58: #{cross_entropy_loss_2d.3} parent=51 // pred_check_branch
        %493 = sbr.rel (%p491) target = $region60
      $region59: #{cross_entropy_loss_2d.3} parent=51 // pred_region
        %p494 = scmp.lt.s32.totalorder %s22, 1
        %s495 = scalar_select %p494, %s22, 1
        %s496 = scalar_lea.vmem %s4, %s495
      $region60: #{cross_entropy_loss_2d.3} parent=51 // pred_fallthru
        _
    $region52: #{cross_entropy_loss_2d.3} parent=5 // pred_fallthru
      _
  $region6: #{cross_entropy_loss_2d.3} parent=0 // loop_footer
    %s15 = sadd.s32 1, %s11
  $region7: #{cross_entropy_loss_2d.3} parent=0 // loop_footer_branch
    %10 = sbr.rel target = $region3
  $region8: #{cross_entropy_loss_2d.3} parent=0 // loop_exit
    _

</llo_original>
